<compile_context>
chip_gen: v5e
topology: v5e:2x2
jax: 0.10.0
libtpu: 0.0.40
codegen_flags: <defaults>
</compile_context>

<pallas_src>
import functools
import numpy as np

import jax
import jax.numpy as jnp
from jax import lax
from jax.experimental import pallas as pl
from jax.experimental.pallas import tpu as pltpu


# ----------------------------- small helpers -----------------------------

def _layernorm(x, gamma, beta, eps=1e-5):
    mu = jnp.mean(x, axis=-1, keepdims=True)
    var = jnp.mean((x - mu) ** 2, axis=-1, keepdims=True)
    return (x - mu) * lax.rsqrt(var + eps) * gamma + beta


def sinusoidal_pe(seq_len, d_model):
    pos = np.arange(seq_len, dtype=np.float32)[:, None]
    i = np.arange(d_model, dtype=np.float32)[None, :]
    angle = pos / np.power(10000.0, (2.0 * np.floor(i / 2.0)) / d_model)
    pe = np.zeros((seq_len, d_model), dtype=np.float32)
    pe[:, 0::2] = np.sin(angle[:, 0::2])
    pe[:, 1::2] = np.cos(angle[:, 1::2])
    return jnp.asarray(pe)


def _padded_block_bytes(shape, dtype):
    s = list(shape)
    s[-1] = ((s[-1] + 127) // 128) * 128
    if len(s) >= 2:
        s[-2] = ((s[-2] + 7) // 8) * 8
    return int(np.prod(s)) * np.dtype(dtype).itemsize


# --------------------- fused encoder kernel (all layers) ---------------------

def _encoder_kernel(B, S, num_heads, d_head,
                    lens_ref,          # SMEM (B,) int32 (scalar prefetch)
                    x_in_ref,          # (B*S, Din) f32
                    in_w_ref,          # (Din, D)   bf16
                    shared_ref,        # (S+3, D)   f32: [0:S]=PE, S=in_b, S+1=in_ln_g, S+2=in_ln_b
                    wqkv_ref,          # (1, 3, D, D) bf16 (Wq pre-scaled by 1/sqrt(d_head))
                    wo_ref,            # (1, D, D)    bf16
                    w1_ref,            # (1, D, d_ff) bf16
                    w2_ref,            # (1, d_ff, D) bf16
                    vecs_ref,          # (1, 10, W)   f32 packed small per-layer vectors
                    out_ref,           # (B*S, D) f32
                    x_scratch,         # VMEM (B*S, D) f32 -- activation carried across layers
                    mask_scratch):     # VMEM (B, S)   f32 -- additive key-padding mask
    l = pl.program_id(0)
    M, D = x_scratch.shape
    H, dh = num_heads, d_head
    d_ff = w1_ref.shape[2]

    # ---- layer 0 only: input projection + LayerNorm + positional encoding,
    #      and the additive key-pad mask (built once, reused by every layer) ----
    @pl.when(l == 0)
    def _():
        sh = shared_ref[...]                                     # (S+3, D) f32
        xin = x_in_ref[...].astype(jnp.bfloat16)
        h = jnp.dot(xin, in_w_ref[...],
                    preferred_element_type=jnp.float32) + sh[S:S + 1, :]
        h = _layernorm(h, sh[S + 1:S + 2, :], sh[S + 2:S + 3, :])
        # TODO(synk): input/attention/ffn dropouts are identity (inference mode).
        pe = sh[:S, :]
        x_scratch[...] = h + jnp.concatenate([pe] * B, axis=0)   # PE tiled over batch

        kpos = lax.broadcasted_iota(jnp.int32, (1, S), 1)
        for bi in range(B):                                      # B is a static constant
            row = jnp.where(kpos >= lens_ref[bi],
                            jnp.float32(-1e9), jnp.float32(0.0)).astype(jnp.float32)
            mask_scratch[pl.ds(bi, 1), :] = row

    # ---- packed per-layer small vectors (one DMA) ----
    vec = vecs_ref[0]                                            # (10, W) f32
    bq, bk, bv = vec[0:1, :D], vec[1:2, :D], vec[2:3, :D]
    bo = vec[3:4, :D]
    b1, b2 = vec[4:5, :d_ff], vec[5:6, :D]
    g1, be1 = vec[6:7, :D], vec[7:8, :D]
    g2, be2 = vec[8:9, :D], vec[9:10, :D]

    x = x_scratch[...]                                           # (M, D) f32
    xb = x.astype(jnp.bfloat16)
    wqkv = wqkv_ref[0]                                           # (3, D, D) bf16

    # ---- self attention: Q/K/V projections with M = B*S rows (MXU-friendly) ----
    q = jnp.dot(xb, wqkv[0], preferred_element_type=jnp.float32) + bq   # pre-scaled
    k = jnp.dot(xb, wqkv[1], preferred_element_type=jnp.float32) + bk
    v = jnp.dot(xb, wqkv[2], preferred_element_type=jnp.float32) + bv

    mask3 = mask_scratch[...][:, None, :]                        # (B, 1, S) additive

    # Heads: static loop.  Only leading-dim (sublane) reshapes; batched einsums
    # use a single leading batch dim (the well-supported Mosaic pattern).
    ctx_heads = []
    for hi in range(H):
        sl = slice(hi * dh, (hi + 1) * dh)
        qh = q[:, sl].reshape(B, S, dh).astype(jnp.bfloat16)
        kh = k[:, sl].reshape(B, S, dh).astype(jnp.bfloat16)
        vh = v[:, sl].reshape(B, S, dh).astype(jnp.bfloat16)

        s_h = jnp.einsum('bqd,bkd->bqk', qh, kh,
                         preferred_element_type=jnp.float32) + mask3    # (B,S,S) f32
        m_h = jnp.max(s_h, axis=-1, keepdims=True)
        p_h = jnp.exp(s_h - m_h)
        p_h = p_h * pl.reciprocal(jnp.sum(p_h, axis=-1, keepdims=True), approx=True)

        c_h = jnp.einsum('bqk,bkd->bqd', p_h.astype(jnp.bfloat16), vh,
                         preferred_element_type=jnp.float32)            # (B,S,dh)
        ctx_heads.append(c_h.reshape(M, dh))

    ctx = jnp.concatenate(ctx_heads, axis=-1)                    # (M, D), head-concat

    attn = jnp.dot(ctx.astype(jnp.bfloat16), wo_ref[0],
                   preferred_element_type=jnp.float32) + bo

    # residual + attention norm (f32)
    x = _layernorm(attn + x, g1, be1)

    # ---- position-wise feed-forward: Linear -> ReLU -> Linear ----
    h1 = jnp.dot(x.astype(jnp.bfloat16), w1_ref[0],
                 preferred_element_type=jnp.float32) + b1
    h1 = jnp.maximum(h1, 0.0)
    h2 = jnp.dot(h1.astype(jnp.bfloat16), w2_ref[0],
                 preferred_element_type=jnp.float32) + b2

    # residual + feed-forward norm
    y = _layernorm(h2 + x, g2, be2)
    x_scratch[...] = y

    @pl.when(l == pl.num_programs(0) - 1)
    def _():
        out_ref[...] = y


# ------------------------------ host wrapper ------------------------------

def transformer_encoder(params, inputs, input_lengths, num_heads):
    B, S, Din = inputs.shape
    D = params["in_w"].shape[1]
    L = params["wqkv"].shape[0]
    d_ff = params["w_ff1"].shape[2]
    d_head = D // num_heads
    M = B * S
    W = params["layer_vecs"].shape[2]

    # shared small vectors + positional encoding packed into a single block
    shared_vec = jnp.concatenate(
        [sinusoidal_pe(S, D), params["in_b"], params["in_ln_g"], params["in_ln_b"]],
        axis=0)                                                  # (S+3, D) f32

    x2d = inputs.reshape(M, Din)                                 # lane-dense row slab

    kernel = functools.partial(_encoder_kernel, B, S, num_heads, d_head)

    in_specs = [
        pl.BlockSpec((M, Din), lambda l, lens: (0, 0)),          # raw inputs (fetched once)
        pl.BlockSpec((Din, D), lambda l, lens: (0, 0)),          # input proj W
        pl.BlockSpec((S + 3, D), lambda l, lens: (0, 0)),        # PE + in_b + input-LN
        pl.BlockSpec((1, 3, D, D), lambda l, lens: (l, 0, 0, 0)),  # Wq/Wk/Wv (per layer)
        pl.BlockSpec((1, D, D), lambda l, lens: (l, 0, 0)),      # Wo
        pl.BlockSpec((1, D, d_ff), lambda l, lens: (l, 0, 0)),   # FFN W1
        pl.BlockSpec((1, d_ff, D), lambda l, lens: (l, 0, 0)),   # FFN W2
        pl.BlockSpec((1, 10, W), lambda l, lens: (l, 0, 0)),     # packed per-layer vectors
    ]
    out_spec = pl.BlockSpec((M, D), lambda l, lens: (0, 0))

    scratch_shapes = [pltpu.VMEM((M, D), jnp.float32),           # carried activation
                      pltpu.VMEM((B, S), jnp.float32)]           # additive key-pad mask

    # Real (double-buffered) VMEM footprint instead of a blanket 64 MiB
    # (64 MiB is the entire physical VMEM of a v7x TensorCore).
    blocks = [((M, Din), jnp.float32), ((Din, D), jnp.bfloat16),
              ((S + 3, D), jnp.float32), ((3, D, D), jnp.bfloat16),
              ((D, D), jnp.bfloat16), ((D, d_ff), jnp.bfloat16),
              ((d_ff, D), jnp.bfloat16), ((10, W), jnp.float32),
              ((M, D), jnp.float32)]
    est = 2 * sum(_padded_block_bytes(s, d) for s, d in blocks)   # double-buffered blocks
    est += _padded_block_bytes((M, D), jnp.float32)               # scratch
    est += _padded_block_bytes((B, S), jnp.float32)
    vmem_limit = int(min(32 << 20, max(8 << 20, 4 * est)))

    grid_spec = pltpu.PrefetchScalarGridSpec(
        num_scalar_prefetch=1,
        grid=(L,),
        in_specs=in_specs,
        out_specs=out_spec,
        scratch_shapes=scratch_shapes,
    )

    out2d = pl.pallas_call(
        kernel,
        out_shape=jax.ShapeDtypeStruct((M, D), jnp.float32),
        grid_spec=grid_spec,
        compiler_params=pltpu.CompilerParams(
            # layer axis carries the VMEM-resident activation -> must stay serial
            dimension_semantics=("arbitrary",),
            vmem_limit_bytes=vmem_limit,
        ),
    )(input_lengths.astype(jnp.int32), x2d, params["in_w"], shared_vec,
      params["wqkv"], params["wo"], params["w_ff1"], params["w_ff2"],
      params["layer_vecs"])

    return out2d.reshape(B, S, D), input_lengths


# ------------------------------ parameters ------------------------------

def init_linear(key, fan_in, fan_out):
    kw, kb = jax.random.split(key)
    bound = float(np.sqrt(6.0 / (fan_in + fan_out)))
    w = jax.random.uniform(kw, (fan_in, fan_out), jnp.float32, -bound, bound)
    b = jax.random.uniform(kb, (1, fan_out), jnp.float32, -0.01, 0.01)
    return w, b


def init_params(key, input_dim, d_model, d_ff, num_layers, num_heads):
    D = d_model
    dh = D // num_heads
    scale = 1.0 / float(np.sqrt(dh))
    W = max(D, d_ff)

    def pad_row(v):                       # (1, n) -> (1, W)
        return jnp.pad(v, ((0, 0), (0, W - v.shape[1])))

    params = {}
    key, k = jax.random.split(key)
    in_w, in_b = init_linear(k, input_dim, D)
    params["in_w"] = in_w.astype(jnp.bfloat16)       # bf16 MXU operand
    params["in_b"] = in_b
    params["in_ln_g"] = jnp.ones((1, D), jnp.float32)
    params["in_ln_b"] = jnp.zeros((1, D), jnp.float32)

    wqkv, wo, w1s, w2s, vecs = [], [], [], [], []
    for _ in range(num_layers):
        key, kq, kk, kv, ko, k1, k2 = jax.random.split(key, 7)
        wq, bq = init_linear(kq, D, D)
        wk, bk = init_linear(kk, D, D)
        wv, bv = init_linear(kv, D, D)
        # fold 1/sqrt(d_head) into the query projection (removes the per-layer
        # O(H*S^2) score scaling inside the kernel)
        wq, bq = wq * scale, bq * scale
        wqkv.append(jnp.stack([wq, wk, wv], axis=0))              # (3, D, D)

        w, bo = init_linear(ko, D, D)
        wo.append(w)
        wf1, b1 = init_linear(k1, D, d_ff)
        w1s.append(wf1)
        wf2, b2 = init_linear(k2, d_ff, D)
        w2s.append(wf2)

        ones = jnp.ones((1, D), jnp.float32)
        zeros = jnp.zeros((1, D), jnp.float32)
        # packed per-layer small vectors -> one DMA per layer step
        # rows: 0 bq, 1 bk, 2 bv, 3 bo, 4 b_ff1, 5 b_ff2, 6 ln1_g, 7 ln1_b, 8 ln2_g, 9 ln2_b
        vecs.append(jnp.concatenate(
            [pad_row(bq), pad_row(bk), pad_row(bv), pad_row(bo),
             pad_row(b1), pad_row(b2),
             pad_row(ones), pad_row(zeros), pad_row(ones), pad_row(zeros)],
            axis=0))                                              # (10, W)

    params["wqkv"] = jnp.stack(wqkv).astype(jnp.bfloat16)         # (L, 3, D, D)
    params["wo"] = jnp.stack(wo).astype(jnp.bfloat16)             # (L, D, D)
    params["w_ff1"] = jnp.stack(w1s).astype(jnp.bfloat16)         # (L, D, d_ff)
    params["w_ff2"] = jnp.stack(w2s).astype(jnp.bfloat16)         # (L, d_ff, D)
    params["layer_vecs"] = jnp.stack(vecs)                        # (L, 10, W) f32
    return params


# ----------------------------------- main -----------------------------------

if __name__ == "__main__":
    batch, seq_len, input_dim = 2, 8, 16
    d_model, num_heads, d_ff, num_layers = 32, 4, 64, 2

    key = jax.random.PRNGKey(0)
    k_in, k_param = jax.random.split(key)
    inputs = jax.random.normal(k_in, (batch, seq_len, input_dim), jnp.float32)
    input_lengths = jnp.array([8, 5], dtype=jnp.int32)

    params = init_params(k_param, input_dim, d_model, d_ff, num_layers, num_heads)

    outputs, out_lengths = transformer_encoder(params, inputs, input_lengths, num_heads)
    outputs = jax.block_until_ready(outputs)

    assert outputs.shape == (batch, seq_len, d_model)
    assert out_lengths.shape == (batch,)
    assert bool(jnp.all(jnp.isfinite(outputs)))
    print("KERNEL_OK")
</pallas_src>

<mosaic_0001>
module attributes {stable_mosaic.version = 11 : i64} {
  func.func @_encoder_kernel(%arg0: i32, %arg1: memref<2xi32, #tpu.memory_space<smem>>, %arg2: memref<16x16xf32, #tpu.memory_space<vmem>>, %arg3: memref<16x32xbf16, #tpu.memory_space<vmem>>, %arg4: memref<11x32xf32, #tpu.memory_space<vmem>>, %arg5: memref<1x3x32x32xbf16, #tpu.memory_space<vmem>>, %arg6: memref<1x32x32xbf16, #tpu.memory_space<vmem>>, %arg7: memref<1x32x64xbf16, #tpu.memory_space<vmem>>, %arg8: memref<1x64x32xbf16, #tpu.memory_space<vmem>>, %arg9: memref<1x10x64xf32, #tpu.memory_space<vmem>>, %arg10: memref<16x32xf32, #tpu.memory_space<vmem>>, %arg11: memref<16x32xf32, #tpu.memory_space<vmem>>, %arg12: memref<2x8xf32, #tpu.memory_space<vmem>>) attributes {dimension_semantics = [#tpu.dimension_semantics<arbitrary>], iteration_bounds = array<i64: 2>, scalar_prefetch = 1 : i64, scratch_operands = 2 : i64, tpu.core_type = #tpu.core_type<tc>, window_params = [{pipeline_mode = #tpu.pipeline_mode<synchronous>, transform_indices = @transform_0, window_bounds = array<i64: 16, 16>}, {pipeline_mode = #tpu.pipeline_mode<synchronous>, transform_indices = @transform_1, window_bounds = array<i64: 16, 32>}, {pipeline_mode = #tpu.pipeline_mode<synchronous>, transform_indices = @transform_2, window_bounds = array<i64: 11, 32>}, {transform_indices = @transform_3, window_bounds = array<i64: 1, 3, 32, 32>}, {transform_indices = @transform_4, window_bounds = array<i64: 1, 32, 32>}, {transform_indices = @transform_5, window_bounds = array<i64: 1, 32, 64>}, {transform_indices = @transform_6, window_bounds = array<i64: 1, 64, 32>}, {transform_indices = @transform_7, window_bounds = array<i64: 1, 10, 64>}, {pipeline_mode = #tpu.pipeline_mode<synchronous>, transform_indices = @transform_8, window_bounds = array<i64: 16, 32>}]} {
    %c0_i32 = arith.constant 0 : i32
    %0 = arith.cmpi eq, %arg0, %c0_i32 : i32
    %1 = arith.extui %0 : i1 to i32
    %c0_i32_0 = arith.constant 0 : i32
    %2 = arith.cmpi ne, %1, %c0_i32_0 : i32
    scf.if %2 {
      %c0_55 = arith.constant 0 : index
      %c0_56 = arith.constant 0 : index
      %207 = vector.load %arg4[%c0_55, %c0_56] : memref<11x32xf32, #tpu.memory_space<vmem>>, vector<11x32xf32>
      %c0_57 = arith.constant 0 : index
      %c0_58 = arith.constant 0 : index
      %208 = vector.load %arg2[%c0_57, %c0_58] : memref<16x16xf32, #tpu.memory_space<vmem>>, vector<16x16xf32>
      %209 = arith.truncf %208 : vector<16x16xf32> to vector<16x16xbf16>
      %c0_59 = arith.constant 0 : index
      %c0_60 = arith.constant 0 : index
      %210 = vector.load %arg3[%c0_59, %c0_60] : memref<16x32xbf16, #tpu.memory_space<vmem>>, vector<16x32xbf16>
      %cst_61 = arith.constant dense<0.000000e+00> : vector<16x32xf32>
      %211 = tpu.matmul %209, %210, %cst_61 {dimension_numbers = #tpu.dot_dimension_numbers<[1], [0], [0], [1], [0, 0, 1, 1], [], []>} : vector<16x16xbf16>, vector<16x32xbf16>, vector<16x32xf32> -> vector<16x32xf32>
      %212 = vector.extract_strided_slice %207 {offsets = [8, 0], sizes = [1, 32], strides = [1, 1]} : vector<11x32xf32> to vector<1x32xf32>
      %213 = vector.broadcast %212 : vector<1x32xf32> to vector<16x32xf32>
      %214 = arith.addf %211, %213 : vector<16x32xf32>
      %215 = vector.extract_strided_slice %207 {offsets = [9, 0], sizes = [1, 32], strides = [1, 1]} : vector<11x32xf32> to vector<1x32xf32>
      %216 = vector.extract_strided_slice %207 {offsets = [10, 0], sizes = [1, 32], strides = [1, 1]} : vector<11x32xf32> to vector<1x32xf32>
      %cst_62 = arith.constant dense<0.000000e+00> : vector<16xf32>
      %217 = vector.multi_reduction <add>, %214, %cst_62 [1] : vector<16x32xf32> to vector<16xf32>
      %218 = vector.shape_cast %217 : vector<16xf32> to vector<16x1xf32>
      %cst_63 = arith.constant 3.200000e+01 : f32
      %219 = vector.broadcast %cst_63 : f32 to vector<16x1xf32>
      %220 = arith.divf %218, %219 : vector<16x1xf32>
      %221 = vector.broadcast %220 : vector<16x1xf32> to vector<16x32xf32>
      %222 = arith.subf %214, %221 : vector<16x32xf32>
      %223 = arith.mulf %222, %222 : vector<16x32xf32>
      %cst_64 = arith.constant dense<0.000000e+00> : vector<16xf32>
      %224 = vector.multi_reduction <add>, %223, %cst_64 [1] : vector<16x32xf32> to vector<16xf32>
      %225 = vector.shape_cast %224 : vector<16xf32> to vector<16x1xf32>
      %cst_65 = arith.constant 3.200000e+01 : f32
      %226 = vector.broadcast %cst_65 : f32 to vector<16x1xf32>
      %227 = arith.divf %225, %226 : vector<16x1xf32>
      %228 = vector.broadcast %220 : vector<16x1xf32> to vector<16x32xf32>
      %229 = arith.subf %214, %228 : vector<16x32xf32>
      %cst_66 = arith.constant 9.99999974E-6 : f32
      %230 = vector.broadcast %cst_66 : f32 to vector<16x1xf32>
      %231 = arith.addf %227, %230 : vector<16x1xf32>
      %232 = math.rsqrt %231 : vector<16x1xf32>
      %233 = vector.broadcast %232 : vector<16x1xf32> to vector<16x32xf32>
      %234 = arith.mulf %229, %233 : vector<16x32xf32>
      %235 = vector.broadcast %215 : vector<1x32xf32> to vector<16x32xf32>
      %236 = arith.mulf %234, %235 : vector<16x32xf32>
      %237 = vector.broadcast %216 : vector<1x32xf32> to vector<16x32xf32>
      %238 = arith.addf %236, %237 : vector<16x32xf32>
      %239 = vector.extract_strided_slice %207 {offsets = [0, 0], sizes = [8, 32], strides = [1, 1]} : vector<11x32xf32> to vector<8x32xf32>
      %240 = tpu.concatenate %239, %239 in 0 : vector<8x32xf32>, vector<8x32xf32> -> vector<16x32xf32>
      %241 = arith.addf %238, %240 : vector<16x32xf32>
      %c0_67 = arith.constant 0 : index
      %c0_68 = arith.constant 0 : index
      %242 = vector.load %arg11[%c0_67, %c0_68] : memref<16x32xf32, #tpu.memory_space<vmem>>, vector<16x32xf32>
      tpu.vector_store %arg11[%c0_67, %c0_68], %241 {strides = array<i32>} : memref<16x32xf32, #tpu.memory_space<vmem>>, vector<16x32xf32>,
      %243 = tpu.iota {dimensions = array<i32: 1>} : vector<1x8xi32>
      %c0_69 = arith.constant 0 : index
      %244 = memref.load %arg1[%c0_69] : memref<2xi32, #tpu.memory_space<smem>>
      %245 = vector.broadcast %244 : i32 to vector<1x8xi32>
      %246 = arith.cmpi sge, %243, %245 : vector<1x8xi32>
      %cst_70 = arith.constant -1.000000e+09 : f32
      %cst_71 = arith.constant 0.000000e+00 : f32
      %247 = vector.broadcast %cst_70 : f32 to vector<1x8xf32>
      %248 = vector.broadcast %cst_71 : f32 to vector<1x8xf32>
      %249 = arith.select %246, %247, %248 : vector<1x8xi1>, vector<1x8xf32>
      %c0_72 = arith.constant 0 : index
      %c0_73 = arith.constant 0 : index
      %250 = vector.load %arg12[%c0_72, %c0_73] : memref<2x8xf32, #tpu.memory_space<vmem>>, vector<1x8xf32>
      tpu.vector_store %arg12[%c0_72, %c0_73], %249 {strides = array<i32>} : memref<2x8xf32, #tpu.memory_space<vmem>>, vector<1x8xf32>,
      %c1 = arith.constant 1 : index
      %251 = memref.load %arg1[%c1] : memref<2xi32, #tpu.memory_space<smem>>
      %252 = vector.broadcast %251 : i32 to vector<1x8xi32>
      %253 = arith.cmpi sge, %243, %252 : vector<1x8xi32>
      %cst_74 = arith.constant -1.000000e+09 : f32
      %cst_75 = arith.constant 0.000000e+00 : f32
      %254 = vector.broadcast %cst_74 : f32 to vector<1x8xf32>
      %255 = vector.broadcast %cst_75 : f32 to vector<1x8xf32>
      %256 = arith.select %253, %254, %255 : vector<1x8xi1>, vector<1x8xf32>
      %c1_76 = arith.constant 1 : index
      %c0_77 = arith.constant 0 : index
      %257 = vector.load %arg12[%c1_76, %c0_77] : memref<2x8xf32, #tpu.memory_space<vmem>>, vector<1x8xf32>
      tpu.vector_store %arg12[%c1_76, %c0_77], %256 {strides = array<i32>} : memref<2x8xf32, #tpu.memory_space<vmem>>, vector<1x8xf32>,
    } else {
    }
    %c0 = arith.constant 0 : index
    %c0_1 = arith.constant 0 : index
    %c0_2 = arith.constant 0 : index
    %3 = vector.load %arg9[%c0, %c0_1, %c0_2] : memref<1x10x64xf32, #tpu.memory_space<vmem>>, vector<1x10x64xf32>
    %4 = vector.shape_cast %3 : vector<1x10x64xf32> to vector<10x64xf32>
    %5 = vector.extract_strided_slice %4 {offsets = [0, 0], sizes = [1, 32], strides = [1, 1]} : vector<10x64xf32> to vector<1x32xf32>
    %6 = vector.extract_strided_slice %4 {offsets = [1, 0], sizes = [1, 32], strides = [1, 1]} : vector<10x64xf32> to vector<1x32xf32>
    %7 = vector.extract_strided_slice %4 {offsets = [2, 0], sizes = [1, 32], strides = [1, 1]} : vector<10x64xf32> to vector<1x32xf32>
    %8 = vector.extract_strided_slice %4 {offsets = [3, 0], sizes = [1, 32], strides = [1, 1]} : vector<10x64xf32> to vector<1x32xf32>
    %9 = vector.extract_strided_slice %4 {offsets = [4, 0], sizes = [1, 64], strides = [1, 1]} : vector<10x64xf32> to vector<1x64xf32>
    %10 = vector.extract_strided_slice %4 {offsets = [5, 0], sizes = [1, 32], strides = [1, 1]} : vector<10x64xf32> to vector<1x32xf32>
    %11 = vector.extract_strided_slice %4 {offsets = [6, 0], sizes = [1, 32], strides = [1, 1]} : vector<10x64xf32> to vector<1x32xf32>
    %12 = vector.extract_strided_slice %4 {offsets = [7, 0], sizes = [1, 32], strides = [1, 1]} : vector<10x64xf32> to vector<1x32xf32>
    %13 = vector.extract_strided_slice %4 {offsets = [8, 0], sizes = [1, 32], strides = [1, 1]} : vector<10x64xf32> to vector<1x32xf32>
    %14 = vector.extract_strided_slice %4 {offsets = [9, 0], sizes = [1, 32], strides = [1, 1]} : vector<10x64xf32> to vector<1x32xf32>
    %c0_3 = arith.constant 0 : index
    %c0_4 = arith.constant 0 : index
    %15 = vector.load %arg11[%c0_3, %c0_4] : memref<16x32xf32, #tpu.memory_space<vmem>>, vector<16x32xf32>
    %16 = arith.truncf %15 : vector<16x32xf32> to vector<16x32xbf16>
    %c0_5 = arith.constant 0 : index
    %c0_6 = arith.constant 0 : index
    %c0_7 = arith.constant 0 : index
    %c0_8 = arith.constant 0 : index
    %17 = vector.load %arg5[%c0_5, %c0_6, %c0_7, %c0_8] : memref<1x3x32x32xbf16, #tpu.memory_space<vmem>>, vector<1x3x32x32xbf16>
    %18 = vector.shape_cast %17 : vector<1x3x32x32xbf16> to vector<3x32x32xbf16>
    %19 = vector.extract_strided_slice %18 {offsets = [0, 0, 0], sizes = [1, 32, 32], strides = [1, 1, 1]} : vector<3x32x32xbf16> to vector<1x32x32xbf16>
    %20 = vector.shape_cast %19 : vector<1x32x32xbf16> to vector<32x32xbf16>
    %cst = arith.constant dense<0.000000e+00> : vector<16x32xf32>
    %21 = tpu.matmul %16, %20, %cst {dimension_numbers = #tpu.dot_dimension_numbers<[1], [0], [0], [1], [0, 0, 1, 1], [], []>} : vector<16x32xbf16>, vector<32x32xbf16>, vector<16x32xf32> -> vector<16x32xf32>
    %22 = vector.broadcast %5 : vector<1x32xf32> to vector<16x32xf32>
    %23 = arith.addf %21, %22 : vector<16x32xf32>
    %24 = vector.extract_strided_slice %18 {offsets = [1, 0, 0], sizes = [1, 32, 32], strides = [1, 1, 1]} : vector<3x32x32xbf16> to vector<1x32x32xbf16>
    %25 = vector.shape_cast %24 : vector<1x32x32xbf16> to vector<32x32xbf16>
    %cst_9 = arith.constant dense<0.000000e+00> : vector<16x32xf32>
    %26 = tpu.matmul %16, %25, %cst_9 {dimension_numbers = #tpu.dot_dimension_numbers<[1], [0], [0], [1], [0, 0, 1, 1], [], []>} : vector<16x32xbf16>, vector<32x32xbf16>, vector<16x32xf32> -> vector<16x32xf32>
    %27 = vector.broadcast %6 : vector<1x32xf32> to vector<16x32xf32>
    %28 = arith.addf %26, %27 : vector<16x32xf32>
    %29 = vector.extract_strided_slice %18 {offsets = [2, 0, 0], sizes = [1, 32, 32], strides = [1, 1, 1]} : vector<3x32x32xbf16> to vector<1x32x32xbf16>
    %30 = vector.shape_cast %29 : vector<1x32x32xbf16> to vector<32x32xbf16>
    %cst_10 = arith.constant dense<0.000000e+00> : vector<16x32xf32>
    %31 = tpu.matmul %16, %30, %cst_10 {dimension_numbers = #tpu.dot_dimension_numbers<[1], [0], [0], [1], [0, 0, 1, 1], [], []>} : vector<16x32xbf16>, vector<32x32xbf16>, vector<16x32xf32> -> vector<16x32xf32>
    %32 = vector.broadcast %7 : vector<1x32xf32> to vector<16x32xf32>
    %33 = arith.addf %31, %32 : vector<16x32xf32>
    %c0_11 = arith.constant 0 : index
    %c0_12 = arith.constant 0 : index
    %34 = vector.load %arg12[%c0_11, %c0_12] : memref<2x8xf32, #tpu.memory_space<vmem>>, vector<2x8xf32>
    %35 = vector.shape_cast %34 : vector<2x8xf32> to vector<2x1x8xf32>
    %36 = vector.extract_strided_slice %23 {offsets = [0, 0], sizes = [16, 8], strides = [1, 1]} : vector<16x32xf32> to vector<16x8xf32>
    %37 = vector.shape_cast %36 : vector<16x8xf32> to vector<2x8x8xf32>
    %38 = arith.truncf %37 : vector<2x8x8xf32> to vector<2x8x8xbf16>
    %39 = vector.extract_strided_slice %28 {offsets = [0, 0], sizes = [16, 8], strides = [1, 1]} : vector<16x32xf32> to vector<16x8xf32>
    %40 = vector.shape_cast %39 : vector<16x8xf32> to vector<2x8x8xf32>
    %41 = arith.truncf %40 : vector<2x8x8xf32> to vector<2x8x8xbf16>
    %42 = vector.extract_strided_slice %33 {offsets = [0, 0], sizes = [16, 8], strides = [1, 1]} : vector<16x32xf32> to vector<16x8xf32>
    %43 = vector.shape_cast %42 : vector<16x8xf32> to vector<2x8x8xf32>
    %44 = arith.truncf %43 : vector<2x8x8xf32> to vector<2x8x8xbf16>
    "tpu.trace_start"() <{level = 10 : i32, message = "bqd,bkd->bqk"}> : () -> ()
    %cst_13 = arith.constant dense<0.000000e+00> : vector<2x8x8xf32>
    %45 = tpu.matmul %38, %41, %cst_13 {dimension_numbers = #tpu.dot_dimension_numbers<[2], [2], [1], [1], [0, 0, 0, 1, 1, 1], [0], [0]>} : vector<2x8x8xbf16>, vector<2x8x8xbf16>, vector<2x8x8xf32> -> vector<2x8x8xf32>
    "tpu.trace_stop"() : () -> ()
    %46 = vector.broadcast %35 : vector<2x1x8xf32> to vector<2x8x8xf32>
    %47 = arith.addf %45, %46 : vector<2x8x8xf32>
    %cst_14 = arith.constant dense<0xFF800000> : vector<2x8xf32>
    %48 = vector.multi_reduction <maximumf>, %47, %cst_14 [2] : vector<2x8x8xf32> to vector<2x8xf32>
    %49 = vector.shape_cast %48 : vector<2x8xf32> to vector<2x8x1xf32>
    %50 = vector.broadcast %49 : vector<2x8x1xf32> to vector<2x8x8xf32>
    %51 = arith.subf %47, %50 : vector<2x8x8xf32>
    %52 = math.exp %51 : vector<2x8x8xf32>
    %cst_15 = arith.constant dense<0.000000e+00> : vector<2x8xf32>
    %53 = vector.multi_reduction <add>, %52, %cst_15 [2] : vector<2x8x8xf32> to vector<2x8xf32>
    %54 = vector.shape_cast %53 : vector<2x8xf32> to vector<2x8x1xf32>
    %55 = tpu.reciprocal %54 {approx = true} : vector<2x8x1xf32> -> vector<2x8x1xf32>
    %56 = vector.broadcast %55 : vector<2x8x1xf32> to vector<2x8x8xf32>
    %57 = arith.mulf %52, %56 : vector<2x8x8xf32>
    %58 = arith.truncf %57 : vector<2x8x8xf32> to vector<2x8x8xbf16>
    "tpu.trace_start"() <{level = 10 : i32, message = "bqk,bkd->bqd"}> : () -> ()
    %cst_16 = arith.constant dense<0.000000e+00> : vector<2x8x8xf32>
    %59 = tpu.matmul %58, %44, %cst_16 {dimension_numbers = #tpu.dot_dimension_numbers<[2], [1], [1], [2], [0, 0, 0, 1, 1, 2], [0], [0]>} : vector<2x8x8xbf16>, vector<2x8x8xbf16>, vector<2x8x8xf32> -> vector<2x8x8xf32>
    "tpu.trace_stop"() : () -> ()
    %60 = vector.shape_cast %59 : vector<2x8x8xf32> to vector<16x8xf32>
    %61 = vector.extract_strided_slice %23 {offsets = [0, 8], sizes = [16, 8], strides = [1, 1]} : vector<16x32xf32> to vector<16x8xf32>
    %62 = vector.shape_cast %61 : vector<16x8xf32> to vector<2x8x8xf32>
    %63 = arith.truncf %62 : vector<2x8x8xf32> to vector<2x8x8xbf16>
    %64 = vector.extract_strided_slice %28 {offsets = [0, 8], sizes = [16, 8], strides = [1, 1]} : vector<16x32xf32> to vector<16x8xf32>
    %65 = vector.shape_cast %64 : vector<16x8xf32> to vector<2x8x8xf32>
    %66 = arith.truncf %65 : vector<2x8x8xf32> to vector<2x8x8xbf16>
    %67 = vector.extract_strided_slice %33 {offsets = [0, 8], sizes = [16, 8], strides = [1, 1]} : vector<16x32xf32> to vector<16x8xf32>
    %68 = vector.shape_cast %67 : vector<16x8xf32> to vector<2x8x8xf32>
    %69 = arith.truncf %68 : vector<2x8x8xf32> to vector<2x8x8xbf16>
    "tpu.trace_start"() <{level = 10 : i32, message = "bqd,bkd->bqk"}> : () -> ()
    %cst_17 = arith.constant dense<0.000000e+00> : vector<2x8x8xf32>
    %70 = tpu.matmul %63, %66, %cst_17 {dimension_numbers = #tpu.dot_dimension_numbers<[2], [2], [1], [1], [0, 0, 0, 1, 1, 1], [0], [0]>} : vector<2x8x8xbf16>, vector<2x8x8xbf16>, vector<2x8x8xf32> -> vector<2x8x8xf32>
    "tpu.trace_stop"() : () -> ()
    %71 = vector.broadcast %35 : vector<2x1x8xf32> to vector<2x8x8xf32>
    %72 = arith.addf %70, %71 : vector<2x8x8xf32>
    %cst_18 = arith.constant dense<0xFF800000> : vector<2x8xf32>
    %73 = vector.multi_reduction <maximumf>, %72, %cst_18 [2] : vector<2x8x8xf32> to vector<2x8xf32>
    %74 = vector.shape_cast %73 : vector<2x8xf32> to vector<2x8x1xf32>
    %75 = vector.broadcast %74 : vector<2x8x1xf32> to vector<2x8x8xf32>
    %76 = arith.subf %72, %75 : vector<2x8x8xf32>
    %77 = math.exp %76 : vector<2x8x8xf32>
    %cst_19 = arith.constant dense<0.000000e+00> : vector<2x8xf32>
    %78 = vector.multi_reduction <add>, %77, %cst_19 [2] : vector<2x8x8xf32> to vector<2x8xf32>
    %79 = vector.shape_cast %78 : vector<2x8xf32> to vector<2x8x1xf32>
    %80 = tpu.reciprocal %79 {approx = true} : vector<2x8x1xf32> -> vector<2x8x1xf32>
    %81 = vector.broadcast %80 : vector<2x8x1xf32> to vector<2x8x8xf32>
    %82 = arith.mulf %77, %81 : vector<2x8x8xf32>
    %83 = arith.truncf %82 : vector<2x8x8xf32> to vector<2x8x8xbf16>
    "tpu.trace_start"() <{level = 10 : i32, message = "bqk,bkd->bqd"}> : () -> ()
    %cst_20 = arith.constant dense<0.000000e+00> : vector<2x8x8xf32>
    %84 = tpu.matmul %83, %69, %cst_20 {dimension_numbers = #tpu.dot_dimension_numbers<[2], [1], [1], [2], [0, 0, 0, 1, 1, 2], [0], [0]>} : vector<2x8x8xbf16>, vector<2x8x8xbf16>, vector<2x8x8xf32> -> vector<2x8x8xf32>
    "tpu.trace_stop"() : () -> ()
    %85 = vector.shape_cast %84 : vector<2x8x8xf32> to vector<16x8xf32>
    %86 = vector.extract_strided_slice %23 {offsets = [0, 16], sizes = [16, 8], strides = [1, 1]} : vector<16x32xf32> to vector<16x8xf32>
    %87 = vector.shape_cast %86 : vector<16x8xf32> to vector<2x8x8xf32>
    %88 = arith.truncf %87 : vector<2x8x8xf32> to vector<2x8x8xbf16>
    %89 = vector.extract_strided_slice %28 {offsets = [0, 16], sizes = [16, 8], strides = [1, 1]} : vector<16x32xf32> to vector<16x8xf32>
    %90 = vector.shape_cast %89 : vector<16x8xf32> to vector<2x8x8xf32>
    %91 = arith.truncf %90 : vector<2x8x8xf32> to vector<2x8x8xbf16>
    %92 = vector.extract_strided_slice %33 {offsets = [0, 16], sizes = [16, 8], strides = [1, 1]} : vector<16x32xf32> to vector<16x8xf32>
    %93 = vector.shape_cast %92 : vector<16x8xf32> to vector<2x8x8xf32>
    %94 = arith.truncf %93 : vector<2x8x8xf32> to vector<2x8x8xbf16>
    "tpu.trace_start"() <{level = 10 : i32, message = "bqd,bkd->bqk"}> : () -> ()
    %cst_21 = arith.constant dense<0.000000e+00> : vector<2x8x8xf32>
    %95 = tpu.matmul %88, %91, %cst_21 {dimension_numbers = #tpu.dot_dimension_numbers<[2], [2], [1], [1], [0, 0, 0, 1, 1, 1], [0], [0]>} : vector<2x8x8xbf16>, vector<2x8x8xbf16>, vector<2x8x8xf32> -> vector<2x8x8xf32>
    "tpu.trace_stop"() : () -> ()
    %96 = vector.broadcast %35 : vector<2x1x8xf32> to vector<2x8x8xf32>
    %97 = arith.addf %95, %96 : vector<2x8x8xf32>
    %cst_22 = arith.constant dense<0xFF800000> : vector<2x8xf32>
    %98 = vector.multi_reduction <maximumf>, %97, %cst_22 [2] : vector<2x8x8xf32> to vector<2x8xf32>
    %99 = vector.shape_cast %98 : vector<2x8xf32> to vector<2x8x1xf32>
    %100 = vector.broadcast %99 : vector<2x8x1xf32> to vector<2x8x8xf32>
    %101 = arith.subf %97, %100 : vector<2x8x8xf32>
    %102 = math.exp %101 : vector<2x8x8xf32>
    %cst_23 = arith.constant dense<0.000000e+00> : vector<2x8xf32>
    %103 = vector.multi_reduction <add>, %102, %cst_23 [2] : vector<2x8x8xf32> to vector<2x8xf32>
    %104 = vector.shape_cast %103 : vector<2x8xf32> to vector<2x8x1xf32>
    %105 = tpu.reciprocal %104 {approx = true} : vector<2x8x1xf32> -> vector<2x8x1xf32>
    %106 = vector.broadcast %105 : vector<2x8x1xf32> to vector<2x8x8xf32>
    %107 = arith.mulf %102, %106 : vector<2x8x8xf32>
    %108 = arith.truncf %107 : vector<2x8x8xf32> to vector<2x8x8xbf16>
    "tpu.trace_start"() <{level = 10 : i32, message = "bqk,bkd->bqd"}> : () -> ()
    %cst_24 = arith.constant dense<0.000000e+00> : vector<2x8x8xf32>
    %109 = tpu.matmul %108, %94, %cst_24 {dimension_numbers = #tpu.dot_dimension_numbers<[2], [1], [1], [2], [0, 0, 0, 1, 1, 2], [0], [0]>} : vector<2x8x8xbf16>, vector<2x8x8xbf16>, vector<2x8x8xf32> -> vector<2x8x8xf32>
    "tpu.trace_stop"() : () -> ()
    %110 = vector.shape_cast %109 : vector<2x8x8xf32> to vector<16x8xf32>
    %111 = vector.extract_strided_slice %23 {offsets = [0, 24], sizes = [16, 8], strides = [1, 1]} : vector<16x32xf32> to vector<16x8xf32>
    %112 = vector.shape_cast %111 : vector<16x8xf32> to vector<2x8x8xf32>
    %113 = arith.truncf %112 : vector<2x8x8xf32> to vector<2x8x8xbf16>
    %114 = vector.extract_strided_slice %28 {offsets = [0, 24], sizes = [16, 8], strides = [1, 1]} : vector<16x32xf32> to vector<16x8xf32>
    %115 = vector.shape_cast %114 : vector<16x8xf32> to vector<2x8x8xf32>
    %116 = arith.truncf %115 : vector<2x8x8xf32> to vector<2x8x8xbf16>
    %117 = vector.extract_strided_slice %33 {offsets = [0, 24], sizes = [16, 8], strides = [1, 1]} : vector<16x32xf32> to vector<16x8xf32>
    %118 = vector.shape_cast %117 : vector<16x8xf32> to vector<2x8x8xf32>
    %119 = arith.truncf %118 : vector<2x8x8xf32> to vector<2x8x8xbf16>
    "tpu.trace_start"() <{level = 10 : i32, message = "bqd,bkd->bqk"}> : () -> ()
    %cst_25 = arith.constant dense<0.000000e+00> : vector<2x8x8xf32>
    %120 = tpu.matmul %113, %116, %cst_25 {dimension_numbers = #tpu.dot_dimension_numbers<[2], [2], [1], [1], [0, 0, 0, 1, 1, 1], [0], [0]>} : vector<2x8x8xbf16>, vector<2x8x8xbf16>, vector<2x8x8xf32> -> vector<2x8x8xf32>
    "tpu.trace_stop"() : () -> ()
    %121 = vector.broadcast %35 : vector<2x1x8xf32> to vector<2x8x8xf32>
    %122 = arith.addf %120, %121 : vector<2x8x8xf32>
    %cst_26 = arith.constant dense<0xFF800000> : vector<2x8xf32>
    %123 = vector.multi_reduction <maximumf>, %122, %cst_26 [2] : vector<2x8x8xf32> to vector<2x8xf32>
    %124 = vector.shape_cast %123 : vector<2x8xf32> to vector<2x8x1xf32>
    %125 = vector.broadcast %124 : vector<2x8x1xf32> to vector<2x8x8xf32>
    %126 = arith.subf %122, %125 : vector<2x8x8xf32>
    %127 = math.exp %126 : vector<2x8x8xf32>
    %cst_27 = arith.constant dense<0.000000e+00> : vector<2x8xf32>
    %128 = vector.multi_reduction <add>, %127, %cst_27 [2] : vector<2x8x8xf32> to vector<2x8xf32>
    %129 = vector.shape_cast %128 : vector<2x8xf32> to vector<2x8x1xf32>
    %130 = tpu.reciprocal %129 {approx = true} : vector<2x8x1xf32> -> vector<2x8x1xf32>
    %131 = vector.broadcast %130 : vector<2x8x1xf32> to vector<2x8x8xf32>
    %132 = arith.mulf %127, %131 : vector<2x8x8xf32>
    %133 = arith.truncf %132 : vector<2x8x8xf32> to vector<2x8x8xbf16>
    "tpu.trace_start"() <{level = 10 : i32, message = "bqk,bkd->bqd"}> : () -> ()
    %cst_28 = arith.constant dense<0.000000e+00> : vector<2x8x8xf32>
    %134 = tpu.matmul %133, %119, %cst_28 {dimension_numbers = #tpu.dot_dimension_numbers<[2], [1], [1], [2], [0, 0, 0, 1, 1, 2], [0], [0]>} : vector<2x8x8xbf16>, vector<2x8x8xbf16>, vector<2x8x8xf32> -> vector<2x8x8xf32>
    "tpu.trace_stop"() : () -> ()
    %135 = vector.shape_cast %134 : vector<2x8x8xf32> to vector<16x8xf32>
    %136 = tpu.concatenate %60, %85, %110, %135 in 1 : vector<16x8xf32>, vector<16x8xf32>, vector<16x8xf32>, vector<16x8xf32> -> vector<16x32xf32>
    %137 = arith.truncf %136 : vector<16x32xf32> to vector<16x32xbf16>
    %c0_29 = arith.constant 0 : index
    %c0_30 = arith.constant 0 : index
    %c0_31 = arith.constant 0 : index
    %138 = vector.load %arg6[%c0_29, %c0_30, %c0_31] : memref<1x32x32xbf16, #tpu.memory_space<vmem>>, vector<1x32x32xbf16>
    %139 = vector.shape_cast %138 : vector<1x32x32xbf16> to vector<32x32xbf16>
    %cst_32 = arith.constant dense<0.000000e+00> : vector<16x32xf32>
    %140 = tpu.matmul %137, %139, %cst_32 {dimension_numbers = #tpu.dot_dimension_numbers<[1], [0], [0], [1], [0, 0, 1, 1], [], []>} : vector<16x32xbf16>, vector<32x32xbf16>, vector<16x32xf32> -> vector<16x32xf32>
    %141 = vector.broadcast %8 : vector<1x32xf32> to vector<16x32xf32>
    %142 = arith.addf %140, %141 : vector<16x32xf32>
    %143 = arith.addf %142, %15 : vector<16x32xf32>
    %cst_33 = arith.constant dense<0.000000e+00> : vector<16xf32>
    %144 = vector.multi_reduction <add>, %143, %cst_33 [1] : vector<16x32xf32> to vector<16xf32>
    %145 = vector.shape_cast %144 : vector<16xf32> to vector<16x1xf32>
    %cst_34 = arith.constant 3.200000e+01 : f32
    %146 = vector.broadcast %cst_34 : f32 to vector<16x1xf32>
    %147 = arith.divf %145, %146 : vector<16x1xf32>
    %148 = vector.broadcast %147 : vector<16x1xf32> to vector<16x32xf32>
    %149 = arith.subf %143, %148 : vector<16x32xf32>
    %150 = arith.mulf %149, %149 : vector<16x32xf32>
    %cst_35 = arith.constant dense<0.000000e+00> : vector<16xf32>
    %151 = vector.multi_reduction <add>, %150, %cst_35 [1] : vector<16x32xf32> to vector<16xf32>
    %152 = vector.shape_cast %151 : vector<16xf32> to vector<16x1xf32>
    %cst_36 = arith.constant 3.200000e+01 : f32
    %153 = vector.broadcast %cst_36 : f32 to vector<16x1xf32>
    %154 = arith.divf %152, %153 : vector<16x1xf32>
    %155 = vector.broadcast %147 : vector<16x1xf32> to vector<16x32xf32>
    %156 = arith.subf %143, %155 : vector<16x32xf32>
    %cst_37 = arith.constant 9.99999974E-6 : f32
    %157 = vector.broadcast %cst_37 : f32 to vector<16x1xf32>
    %158 = arith.addf %154, %157 : vector<16x1xf32>
    %159 = math.rsqrt %158 : vector<16x1xf32>
    %160 = vector.broadcast %159 : vector<16x1xf32> to vector<16x32xf32>
    %161 = arith.mulf %156, %160 : vector<16x32xf32>
    %162 = vector.broadcast %11 : vector<1x32xf32> to vector<16x32xf32>
    %163 = arith.mulf %161, %162 : vector<16x32xf32>
    %164 = vector.broadcast %12 : vector<1x32xf32> to vector<16x32xf32>
    %165 = arith.addf %163, %164 : vector<16x32xf32>
    %166 = arith.truncf %165 : vector<16x32xf32> to vector<16x32xbf16>
    %c0_38 = arith.constant 0 : index
    %c0_39 = arith.constant 0 : index
    %c0_40 = arith.constant 0 : index
    %167 = vector.load %arg7[%c0_38, %c0_39, %c0_40] : memref<1x32x64xbf16, #tpu.memory_space<vmem>>, vector<1x32x64xbf16>
    %168 = vector.shape_cast %167 : vector<1x32x64xbf16> to vector<32x64xbf16>
    %cst_41 = arith.constant dense<0.000000e+00> : vector<16x64xf32>
    %169 = tpu.matmul %166, %168, %cst_41 {dimension_numbers = #tpu.dot_dimension_numbers<[1], [0], [0], [1], [0, 0, 1, 1], [], []>} : vector<16x32xbf16>, vector<32x64xbf16>, vector<16x64xf32> -> vector<16x64xf32>
    %170 = vector.broadcast %9 : vector<1x64xf32> to vector<16x64xf32>
    %171 = arith.addf %169, %170 : vector<16x64xf32>
    %cst_42 = arith.constant 0.000000e+00 : f32
    %172 = vector.broadcast %cst_42 : f32 to vector<16x64xf32>
    %173 = arith.maximumf %171, %172 : vector<16x64xf32>
    %174 = arith.truncf %173 : vector<16x64xf32> to vector<16x64xbf16>
    %c0_43 = arith.constant 0 : index
    %c0_44 = arith.constant 0 : index
    %c0_45 = arith.constant 0 : index
    %175 = vector.load %arg8[%c0_43, %c0_44, %c0_45] : memref<1x64x32xbf16, #tpu.memory_space<vmem>>, vector<1x64x32xbf16>
    %176 = vector.shape_cast %175 : vector<1x64x32xbf16> to vector<64x32xbf16>
    %cst_46 = arith.constant dense<0.000000e+00> : vector<16x32xf32>
    %177 = tpu.matmul %174, %176, %cst_46 {dimension_numbers = #tpu.dot_dimension_numbers<[1], [0], [0], [1], [0, 0, 1, 1], [], []>} : vector<16x64xbf16>, vector<64x32xbf16>, vector<16x32xf32> -> vector<16x32xf32>
    %178 = vector.broadcast %10 : vector<1x32xf32> to vector<16x32xf32>
    %179 = arith.addf %177, %178 : vector<16x32xf32>
    %180 = arith.addf %179, %165 : vector<16x32xf32>
    %cst_47 = arith.constant dense<0.000000e+00> : vector<16xf32>
    %181 = vector.multi_reduction <add>, %180, %cst_47 [1] : vector<16x32xf32> to vector<16xf32>
    %182 = vector.shape_cast %181 : vector<16xf32> to vector<16x1xf32>
    %cst_48 = arith.constant 3.200000e+01 : f32
    %183 = vector.broadcast %cst_48 : f32 to vector<16x1xf32>
    %184 = arith.divf %182, %183 : vector<16x1xf32>
    %185 = vector.broadcast %184 : vector<16x1xf32> to vector<16x32xf32>
    %186 = arith.subf %180, %185 : vector<16x32xf32>
    %187 = arith.mulf %186, %186 : vector<16x32xf32>
    %cst_49 = arith.constant dense<0.000000e+00> : vector<16xf32>
    %188 = vector.multi_reduction <add>, %187, %cst_49 [1] : vector<16x32xf32> to vector<16xf32>
    %189 = vector.shape_cast %188 : vector<16xf32> to vector<16x1xf32>
    %cst_50 = arith.constant 3.200000e+01 : f32
    %190 = vector.broadcast %cst_50 : f32 to vector<16x1xf32>
    %191 = arith.divf %189, %190 : vector<16x1xf32>
    %192 = vector.broadcast %184 : vector<16x1xf32> to vector<16x32xf32>
    %193 = arith.subf %180, %192 : vector<16x32xf32>
    %cst_51 = arith.constant 9.99999974E-6 : f32
    %194 = vector.broadcast %cst_51 : f32 to vector<16x1xf32>
    %195 = arith.addf %191, %194 : vector<16x1xf32>
    %196 = math.rsqrt %195 : vector<16x1xf32>
    %197 = vector.broadcast %196 : vector<16x1xf32> to vector<16x32xf32>
    %198 = arith.mulf %193, %197 : vector<16x32xf32>
    %199 = vector.broadcast %13 : vector<1x32xf32> to vector<16x32xf32>
    %200 = arith.mulf %198, %199 : vector<16x32xf32>
    %201 = vector.broadcast %14 : vector<1x32xf32> to vector<16x32xf32>
    %202 = arith.addf %200, %201 : vector<16x32xf32>
    %c0_52 = arith.constant 0 : index
    %c0_53 = arith.constant 0 : index
    %203 = vector.load %arg11[%c0_52, %c0_53] : memref<16x32xf32, #tpu.memory_space<vmem>>, vector<16x32xf32>
    tpu.vector_store %arg11[%c0_52, %c0_53], %202 {strides = array<i32>} : memref<16x32xf32, #tpu.memory_space<vmem>>, vector<16x32xf32>,
    %c1_i32 = arith.constant 1 : i32
    %204 = arith.cmpi eq, %arg0, %c1_i32 : i32
    %205 = arith.extui %204 : i1 to i32
    %c0_i32_54 = arith.constant 0 : i32
    %206 = arith.cmpi ne, %205, %c0_i32_54 : i32
    scf.if %206 {
      %c0_55 = arith.constant 0 : index
      %c0_56 = arith.constant 0 : index
      %207 = vector.load %arg10[%c0_55, %c0_56] : memref<16x32xf32, #tpu.memory_space<vmem>>, vector<16x32xf32>
      tpu.vector_store %arg10[%c0_55, %c0_56], %202 {strides = array<i32>} : memref<16x32xf32, #tpu.memory_space<vmem>>, vector<16x32xf32>,
    } else {
    }
    return
  }
  func.func @transform_0(%arg0: i32, %arg1: memref<2xi32, #tpu.memory_space<smem>>) -> (i32, i32) {
    %c0_i32 = arith.constant 0 : i32
    %c0_i32_0 = arith.constant 0 : i32
    %c0_i32_1 = arith.constant 0 : i32
    return %c0_i32, %c0_i32_0 : i32, i32
  }
  func.func @transform_1(%arg0: i32, %arg1: memref<2xi32, #tpu.memory_space<smem>>) -> (i32, i32) {
    %c0_i32 = arith.constant 0 : i32
    %c0_i32_0 = arith.constant 0 : i32
    %c0_i32_1 = arith.constant 0 : i32
    return %c0_i32, %c0_i32_0 : i32, i32
  }
  func.func @transform_2(%arg0: i32, %arg1: memref<2xi32, #tpu.memory_space<smem>>) -> (i32, i32) {
    %c0_i32 = arith.constant 0 : i32
    %c0_i32_0 = arith.constant 0 : i32
    %c0_i32_1 = arith.constant 0 : i32
    return %c0_i32, %c0_i32_0 : i32, i32
  }
  func.func @transform_3(%arg0: i32, %arg1: memref<2xi32, #tpu.memory_space<smem>>) -> (i32, i32, i32, i32) {
    %c0_i32 = arith.constant 0 : i32
    %c0_i32_0 = arith.constant 0 : i32
    %c0_i32_1 = arith.constant 0 : i32
    %c0_i32_2 = arith.constant 0 : i32
    return %arg0, %c0_i32, %c0_i32_0, %c0_i32_1 : i32, i32, i32, i32
  }
  func.func @transform_4(%arg0: i32, %arg1: memref<2xi32, #tpu.memory_space<smem>>) -> (i32, i32, i32) {
    %c0_i32 = arith.constant 0 : i32
    %c0_i32_0 = arith.constant 0 : i32
    %c0_i32_1 = arith.constant 0 : i32
    return %arg0, %c0_i32, %c0_i32_0 : i32, i32, i32
  }
  func.func @transform_5(%arg0: i32, %arg1: memref<2xi32, #tpu.memory_space<smem>>) -> (i32, i32, i32) {
    %c0_i32 = arith.constant 0 : i32
    %c0_i32_0 = arith.constant 0 : i32
    %c0_i32_1 = arith.constant 0 : i32
    return %arg0, %c0_i32, %c0_i32_0 : i32, i32, i32
  }
  func.func @transform_6(%arg0: i32, %arg1: memref<2xi32, #tpu.memory_space<smem>>) -> (i32, i32, i32) {
    %c0_i32 = arith.constant 0 : i32
    %c0_i32_0 = arith.constant 0 : i32
    %c0_i32_1 = arith.constant 0 : i32
    return %arg0, %c0_i32, %c0_i32_0 : i32, i32, i32
  }
  func.func @transform_7(%arg0: i32, %arg1: memref<2xi32, #tpu.memory_space<smem>>) -> (i32, i32, i32) {
    %c0_i32 = arith.constant 0 : i32
    %c0_i32_0 = arith.constant 0 : i32
    %c0_i32_1 = arith.constant 0 : i32
    return %arg0, %c0_i32, %c0_i32_0 : i32, i32, i32
  }
  func.func @transform_8(%arg0: i32, %arg1: memref<2xi32, #tpu.memory_space<smem>>) -> (i32, i32) {
    %c0_i32 = arith.constant 0 : i32
    %c0_i32_0 = arith.constant 0 : i32
    %c0_i32_1 = arith.constant 0 : i32
    return %c0_i32, %c0_i32_0 : i32, i32
  }
}

</mosaic_0001>

<llo_original>
// kernel: tpu_custom_call.1
$region0: #{tpu_custom_call.1}
  #allocation0 [shape = 'u32[]', space=smem, size = 0x4, offset = 0x4, fixed_abs, tag = 'smem constant byte address 0x4 - core index']
  #allocation1 [shape = 'u32[72,128]{1,0:T(1,128)}', space=vmem, size = 0x9000, scoped, tag = 'internal scratch']
  #allocation2 [shape = 'f32[16,32]{1,0:T(8,128)}', space=vmem, size = 0x2000, scoped, tag = 'scratch operand']
  #allocation3 [shape = 'f32[2,8]{1,0:T(2,128)}', space=vmem, size = 0x400, scoped, tag = 'scratch operand']
  #allocation4 [shape = 's32[1]{0}', space=sflag, size = 0x4, scoped, tag = 'scoped memory for tpu_custom_call.1']
  #allocation5 [shape = 'u8[512]{0}', space=smem, size = 0x200, scoped, tag = 'prefetched SMEM operand 0']
  %s0 = inlined_call_operand.vmem [shape: s32[2], index: 0, kind: input, shape index: {}]
  %s1 = inlined_call_operand.vmem [shape: f32[16,16], index: 1, kind: input, shape index: {}]
  %s2 = inlined_call_operand.vmem [shape: bf16[16,32], index: 2, kind: input, shape index: {}]
  %s3 = inlined_call_operand.hbm [shape: f32[11,32], index: 3, kind: input, shape index: {}]
  %s4 = inlined_call_operand.vmem [shape: bf16[2,3,32,32], index: 4, kind: input, shape index: {}]
  %s5 = inlined_call_operand.hbm [shape: bf16[2,32,32], index: 5, kind: input, shape index: {}]
  %s6 = inlined_call_operand.hbm [shape: bf16[2,32,64], index: 6, kind: input, shape index: {}]
  %s7 = inlined_call_operand.vmem [shape: bf16[2,64,32], index: 7, kind: input, shape index: {}]
  %s8 = inlined_call_operand.vmem [shape: f32[2,10,64], index: 8, kind: input, shape index: {}]
  %s9 = inlined_call_operand.hbm [shape: f32[16,32], index: 9, kind: output, shape index: {}]
  %s10 = sld [smem:[#allocation0]]
  $region85: #{tpu_custom_call.1} parent=0
    _
  %s12 = ssub.s32 1, %s10
  %s13 = scalar_select 0, %s12, %s10
  %s15 = sshll.u32 %s0, 4
  %s16 = int_to_ptr.vmem [resolvable:$true] %s15
  %18 = dma.vmem_to_smem %s16, 16, [#allocation5], [#allocation4]
  %20 = dma.done [#allocation4], 16
  %21 = sfence
  $region1: #{tpu_custom_call.1} parent=0
    #allocation6 [shape = 'u8[8192]{0}', space=vmem, size = 0x2000, scoped, tag = 'input window, operand 3, single buffered']
    #allocation7 [shape = 's32[2]{0}', space=sflag, size = 0x8, scoped, tag = 'scoped memory for tpu_custom_call.1']
    #allocation8 [shape = 's32[2]{0}', space=sflag, size = 0x8, scoped, tag = 'scoped memory for tpu_custom_call.1']
    #allocation9 [shape = 'u8[16384]{0}', space=vmem, size = 0x4000, scoped, tag = 'input window, operand 5']
    #allocation10 [shape = 's32[2]{0}', space=sflag, size = 0x8, scoped, tag = 'scoped memory for tpu_custom_call.1']
    #allocation11 [shape = 'u8[16384]{0}', space=vmem, size = 0x4000, scoped, tag = 'input window, operand 6']
    #allocation12 [shape = 'u8[8192]{0}', space=vmem, size = 0x2000, scoped, tag = 'output window, operand 0, single buffered']
    %22 = vsyncpa [#allocation7], 0
    %23 = vsyncpa [#allocation10], 0
    %s24 = scalar_lea.sflag [#allocation10], 1
    %25 = vsyncpa %s24, 0
    %26 = vsyncpa [#allocation8], 0
    loop: start=0, step=1, limit=4
    $region2: #{tpu_custom_call.1} parent=1 // loop_pre_header
      _
    $region3: #{tpu_custom_call.1} parent=1 // loop_header
      %s28 = sphi 0, %s32
      %p29 = scmp.ge.s32.totalorder %s28, 4
      %s36 = sphi 0, %s36
      %s38 = sphi 0, %s36
      %s39 = sphi 0, %s38
      %s53 = sphi 0, %s39
      %s57 = sphi 0, %s57
      %s59 = sphi 0, %s57
      %s60 = sphi 0, %s59
      %s74 = sphi 0, %s60
      %s78 = sphi 0, %s78
      %s80 = sphi 0, %s78
      %s81 = sphi 0, %s80
      %s95 = sphi 0, %s81
      %s101 = sphi 0, %s103
      %s104 = sphi 0, %s101
      %s105 = sphi 0, %s104
      %s121 = sphi 0, %s105
      %s127 = sphi 0, %s129
      %s130 = sphi 0, %s127
      %s131 = sphi 0, %s130
      %s147 = sphi 0, %s131
      %s153 = sphi 0, %s155
      %s156 = sphi 0, %s153
      %s157 = sphi 0, %s156
      %s173 = sphi 0, %s157
      %s179 = sphi 0, %s181
      %s182 = sphi 0, %s179
      %s183 = sphi 0, %s182
      %s199 = sphi 0, %s183
      %s205 = sphi 0, %s207
      %s208 = sphi 0, %s205
      %s209 = sphi 0, %s208
      %s225 = sphi 0, %s209
      %s229 = sphi 0, %s229
      %s231 = sphi 0, %s229
      %s232 = sphi 0, %s231
      %s246 = sphi 0, %s232
    $region4: #{tpu_custom_call.1} parent=1 // loop_header_branch
      %31 = sbr.rel (%p29) target = $region8
    $region5: #{tpu_custom_call.1} parent=1 // loop_body
      %s33 = ssub.s32 %s28, 1
      %s34 = ssub.s32 %s28, 2
      %s35 = sadd.s32 %s28, 1
      %s37 = sadd.s32 %s36, 1
      %p40 = scmp.eq.s32.totalorder %s28, 1
      %p41 = scmp.ne.s32.totalorder %s36, %s38
      %p42 = scmp.eq.s32.totalorder %s28, 0
      %p43 = por %p41, %p42
      %p44 = scmp.ne.s32.totalorder %s36, %s38
      %p45 = scmp.eq.s32.totalorder %s33, 1
      %p46 = por %p44, %p45
      %p47 = scmp.ne.s32.totalorder %s38, %s39
      %p48 = scmp.eq.s32.totalorder %s33, 0
      %p49 = por %p47, %p48
      %p50 = scmp.ne.s32.totalorder %s38, %s39
      %p51 = scmp.eq.s32.totalorder %s34, 1
      %p52 = por %p50, %p51
      %p54 = scmp.ne.s32.totalorder %s39, %s53
      %p55 = scmp.eq.s32.totalorder %s34, 0
      %p56 = por %p54, %p55
      %s58 = sadd.s32 %s57, 1
      %p61 = scmp.eq.s32.totalorder %s28, 1
      %p62 = scmp.ne.s32.totalorder %s57, %s59
      %p63 = scmp.eq.s32.totalorder %s28, 0
      %p64 = por %p62, %p63
      %p65 = scmp.ne.s32.totalorder %s57, %s59
      %p66 = scmp.eq.s32.totalorder %s33, 1
      %p67 = por %p65, %p66
      %p68 = scmp.ne.s32.totalorder %s59, %s60
      %p69 = scmp.eq.s32.totalorder %s33, 0
      %p70 = por %p68, %p69
      %p71 = scmp.ne.s32.totalorder %s59, %s60
      %p72 = scmp.eq.s32.totalorder %s34, 1
      %p73 = por %p71, %p72
      %p75 = scmp.ne.s32.totalorder %s60, %s74
      %p76 = scmp.eq.s32.totalorder %s34, 0
      %p77 = por %p75, %p76
      %s79 = sadd.s32 %s78, 1
      %p82 = scmp.eq.s32.totalorder %s28, 1
      %p83 = scmp.ne.s32.totalorder %s78, %s80
      %p84 = scmp.eq.s32.totalorder %s28, 0
      %p85 = por %p83, %p84
      %p86 = scmp.ne.s32.totalorder %s78, %s80
      %p87 = scmp.eq.s32.totalorder %s33, 1
      %p88 = por %p86, %p87
      %p89 = scmp.ne.s32.totalorder %s80, %s81
      %p90 = scmp.eq.s32.totalorder %s33, 0
      %p91 = por %p89, %p90
      %p92 = scmp.ne.s32.totalorder %s80, %s81
      %p93 = scmp.eq.s32.totalorder %s34, 1
      %p94 = por %p92, %p93
      %p96 = scmp.ne.s32.totalorder %s81, %s95
      %p97 = scmp.eq.s32.totalorder %s34, 0
      %p98 = por %p96, %p97
      %s99 = ssub.s32 %s28, %s35
      %p100 = scmp.eq.s32.totalorder %s99, 0
      %s102 = sadd.s32 %s101, 1
      %s103 = scalar_select %p100, %s101, %s102
      %p106 = pneg %p100
      %p107 = scmp.eq.s32.totalorder %s28, 1
      %p108 = por %p106, %p107
      %p109 = scmp.ne.s32.totalorder %s101, %s104
      %p110 = scmp.eq.s32.totalorder %s28, 0
      %p111 = por %p109, %p110
      %p112 = scmp.ne.s32.totalorder %s101, %s104
      %p113 = scmp.eq.s32.totalorder %s33, 1
      %p114 = por %p112, %p113
      %p115 = scmp.ne.s32.totalorder %s104, %s105
      %p116 = scmp.eq.s32.totalorder %s33, 0
      %p117 = por %p115, %p116
      %p118 = scmp.ne.s32.totalorder %s104, %s105
      %p119 = scmp.eq.s32.totalorder %s34, 1
      %p120 = por %p118, %p119
      %p122 = scmp.ne.s32.totalorder %s105, %s121
      %p123 = scmp.eq.s32.totalorder %s34, 0
      %p124 = por %p122, %p123
      %s125 = ssub.s32 %s28, %s35
      %p126 = scmp.eq.s32.totalorder %s125, 0
      %s128 = sadd.s32 %s127, 1
      %s129 = scalar_select %p126, %s127, %s128
      %p132 = pneg %p126
      %p133 = scmp.eq.s32.totalorder %s28, 1
      %p134 = por %p132, %p133
      %p135 = scmp.ne.s32.totalorder %s127, %s130
      %p136 = scmp.eq.s32.totalorder %s28, 0
      %p137 = por %p135, %p136
      %p138 = scmp.ne.s32.totalorder %s127, %s130
      %p139 = scmp.eq.s32.totalorder %s33, 1
      %p140 = por %p138, %p139
      %p141 = scmp.ne.s32.totalorder %s130, %s131
      %p142 = scmp.eq.s32.totalorder %s33, 0
      %p143 = por %p141, %p142
      %p144 = scmp.ne.s32.totalorder %s130, %s131
      %p145 = scmp.eq.s32.totalorder %s34, 1
      %p146 = por %p144, %p145
      %p148 = scmp.ne.s32.totalorder %s131, %s147
      %p149 = scmp.eq.s32.totalorder %s34, 0
      %p150 = por %p148, %p149
      %s151 = ssub.s32 %s28, %s35
      %p152 = scmp.eq.s32.totalorder %s151, 0
      %s154 = sadd.s32 %s153, 1
      %s155 = scalar_select %p152, %s153, %s154
      %p158 = pneg %p152
      %p159 = scmp.eq.s32.totalorder %s28, 1
      %p160 = por %p158, %p159
      %p161 = scmp.ne.s32.totalorder %s153, %s156
      %p162 = scmp.eq.s32.totalorder %s28, 0
      %p163 = por %p161, %p162
      %p164 = scmp.ne.s32.totalorder %s153, %s156
      %p165 = scmp.eq.s32.totalorder %s33, 1
      %p166 = por %p164, %p165
      %p167 = scmp.ne.s32.totalorder %s156, %s157
      %p168 = scmp.eq.s32.totalorder %s33, 0
      %p169 = por %p167, %p168
      %p170 = scmp.ne.s32.totalorder %s156, %s157
      %p171 = scmp.eq.s32.totalorder %s34, 1
      %p172 = por %p170, %p171
      %p174 = scmp.ne.s32.totalorder %s157, %s173
      %p175 = scmp.eq.s32.totalorder %s34, 0
      %p176 = por %p174, %p175
      %s177 = ssub.s32 %s28, %s35
      %p178 = scmp.eq.s32.totalorder %s177, 0
      %s180 = sadd.s32 %s179, 1
      %s181 = scalar_select %p178, %s179, %s180
      %p184 = pneg %p178
      %p185 = scmp.eq.s32.totalorder %s28, 1
      %p186 = por %p184, %p185
      %p187 = scmp.ne.s32.totalorder %s179, %s182
      %p188 = scmp.eq.s32.totalorder %s28, 0
      %p189 = por %p187, %p188
      %p190 = scmp.ne.s32.totalorder %s179, %s182
      %p191 = scmp.eq.s32.totalorder %s33, 1
      %p192 = por %p190, %p191
      %p193 = scmp.ne.s32.totalorder %s182, %s183
      %p194 = scmp.eq.s32.totalorder %s33, 0
      %p195 = por %p193, %p194
      %p196 = scmp.ne.s32.totalorder %s182, %s183
      %p197 = scmp.eq.s32.totalorder %s34, 1
      %p198 = por %p196, %p197
      %p200 = scmp.ne.s32.totalorder %s183, %s199
      %p201 = scmp.eq.s32.totalorder %s34, 0
      %p202 = por %p200, %p201
      %s203 = ssub.s32 %s28, %s35
      %p204 = scmp.eq.s32.totalorder %s203, 0
      %s206 = sadd.s32 %s205, 1
      %s207 = scalar_select %p204, %s205, %s206
      %p210 = pneg %p204
      %p211 = scmp.eq.s32.totalorder %s28, 1
      %p212 = por %p210, %p211
      %p213 = scmp.ne.s32.totalorder %s205, %s208
      %p214 = scmp.eq.s32.totalorder %s28, 0
      %p215 = por %p213, %p214
      %p216 = scmp.ne.s32.totalorder %s205, %s208
      %p217 = scmp.eq.s32.totalorder %s33, 1
      %p218 = por %p216, %p217
      %p219 = scmp.ne.s32.totalorder %s208, %s209
      %p220 = scmp.eq.s32.totalorder %s33, 0
      %p221 = por %p219, %p220
      %p222 = scmp.ne.s32.totalorder %s208, %s209
      %p223 = scmp.eq.s32.totalorder %s34, 1
      %p224 = por %p222, %p223
      %p226 = scmp.ne.s32.totalorder %s209, %s225
      %p227 = scmp.eq.s32.totalorder %s34, 0
      %p228 = por %p226, %p227
      %s230 = sadd.s32 %s229, 1
      %p233 = scmp.eq.s32.totalorder %s28, 1
      %p234 = scmp.ne.s32.totalorder %s229, %s231
      %p235 = scmp.eq.s32.totalorder %s28, 0
      %p236 = por %p234, %p235
      %p237 = scmp.ne.s32.totalorder %s229, %s231
      %p238 = scmp.eq.s32.totalorder %s33, 1
      %p239 = por %p237, %p238
      %p240 = scmp.ne.s32.totalorder %s231, %s232
      %p241 = scmp.eq.s32.totalorder %s33, 0
      %p242 = por %p240, %p241
      %p243 = scmp.ne.s32.totalorder %s231, %s232
      %p244 = scmp.eq.s32.totalorder %s34, 1
      %p245 = por %p243, %p244
      %p247 = scmp.ne.s32.totalorder %s232, %s246
      %p248 = scmp.eq.s32.totalorder %s34, 0
      %p249 = por %p247, %p248
      %p250 = scmp.le.s32.totalorder 1, %s28
      %p251 = scmp.lt.s32.totalorder %s28, 3
      %p252 = pnand %p250, %p251
      %p253 = pneg %p252
      // Predicated region
      $region9: #{tpu_custom_call.1} parent=5 // pred_check
        _
      $region10: #{tpu_custom_call.1} parent=5 // pred_check_branch
        %255 = sbr.rel (%p252) target = $region12
      $region11: #{tpu_custom_call.1} parent=5 // pred_region
        %s256 = ssub.s32 %s28, 1
        // Predicated region
        $region13: #{tpu_custom_call.1} parent=11 // pred_check
          %p257 = pneg %p49
        $region14: #{tpu_custom_call.1} parent=11 // pred_check_branch
          %259 = sbr.rel (%p257) target = $region16
        $region15: #{tpu_custom_call.1} parent=11 // pred_region
          _
        $region16: #{tpu_custom_call.1} parent=11 // pred_fallthru
          _
        // Predicated region
        $region17: #{tpu_custom_call.1} parent=11 // pred_check
          %p260 = pneg %p70
        $region18: #{tpu_custom_call.1} parent=11 // pred_check_branch
          %262 = sbr.rel (%p260) target = $region20
        $region19: #{tpu_custom_call.1} parent=11 // pred_region
          _
        $region20: #{tpu_custom_call.1} parent=11 // pred_fallthru
          _
        // Predicated region
        $region21: #{tpu_custom_call.1} parent=11 // pred_check
          %p263 = pneg %p91
        $region22: #{tpu_custom_call.1} parent=11 // pred_check_branch
          %265 = sbr.rel (%p263) target = $region24
        $region23: #{tpu_custom_call.1} parent=11 // pred_region
          %267 = vsyncadd [#allocation7], 0
          %s268 = sshll.u32 %s3, 4
          %s269 = int_to_ptr.hbm [resolvable:$true] %s268
          %s270 = sshll.u32 [#allocation6], 4
          %s271 = int_to_ptr.vmem [resolvable:$true] %s270
          %276 = dma.hbm_to_vmem [thread:$0]  %s269, 256, %s271, [#allocation7], 128, 128, 8
        $region24: #{tpu_custom_call.1} parent=11 // pred_fallthru
          _
      $region12: #{tpu_custom_call.1} parent=5 // pred_fallthru
        _
      %p277 = scmp.lt.s32.totalorder %s28, 2
      // Predicated region
      $region25: #{tpu_custom_call.1} parent=5 // pred_check
        %p278 = pneg %p277
      $region26: #{tpu_custom_call.1} parent=5 // pred_check_branch
        %280 = sbr.rel (%p278) target = $region28
      $region27: #{tpu_custom_call.1} parent=5 // pred_region
        // Predicated region
        $region29: #{tpu_custom_call.1} parent=27 // pred_check
          %p281 = pneg %p111
        $region30: #{tpu_custom_call.1} parent=27 // pred_check_branch
          %283 = sbr.rel (%p281) target = $region32
        $region31: #{tpu_custom_call.1} parent=27 // pred_region
          %p284 = scmp.lt.s32.totalorder %s28, 1
          %s285 = scalar_select %p284, %s28, 1
          %s286 = smul.addr %s285, 12
          %s287 = smul.addr %s286, 4
          %s288 = scalar_lea.vmem %s4, %s287
        $region32: #{tpu_custom_call.1} parent=27 // pred_fallthru
          _
        // Predicated region
        $region33: #{tpu_custom_call.1} parent=27 // pred_check
          %p289 = pneg %p137
        $region34: #{tpu_custom_call.1} parent=27 // pred_check_branch
          %291 = sbr.rel (%p289) target = $region36
        $region35: #{tpu_custom_call.1} parent=27 // pred_region
          %s292 = sand.u32 %s28, 1
          %s293 = scalar_lea.sflag [#allocation10], %s292
          %s294 = sand.u32 %s127, 1
          %s295 = smul.addr %s294, 16
          %s296 = scalar_lea.vmem [#allocation9], %s295
          %298 = vsyncadd %s293, 0
          %s299 = smul.addr %s28, 4
          %s300 = smul.addr %s299, 4
          %s301 = scalar_lea.hbm %s5, %s300
          %s302 = sshll.u32 %s301, 4
          %s303 = int_to_ptr.hbm [resolvable:$true] %s302
          %s304 = sshll.u32 %s296, 4
          %s305 = int_to_ptr.vmem [resolvable:$true] %s304
          %310 = dma.hbm_to_vmem [thread:$0]  %s303, 256, %s305, %s293, 64, 64, 4
        $region36: #{tpu_custom_call.1} parent=27 // pred_fallthru
          _
        // Predicated region
        $region37: #{tpu_custom_call.1} parent=27 // pred_check
          %p311 = pneg %p163
        $region38: #{tpu_custom_call.1} parent=27 // pred_check_branch
          %313 = sbr.rel (%p311) target = $region40
        $region39: #{tpu_custom_call.1} parent=27 // pred_region
          %s314 = sand.u32 %s28, 1
          %s315 = scalar_lea.sflag [#allocation10], %s314
          %s316 = sand.u32 %s153, 1
          %s317 = smul.addr %s316, 16
          %s318 = scalar_lea.vmem [#allocation11], %s317
          %320 = vsyncadd %s315, 0
          %s321 = smul.addr %s28, 4
          %s322 = smul.addr %s321, 4
          %s323 = scalar_lea.hbm %s6, %s322
          %s324 = sshll.u32 %s323, 4
          %s325 = int_to_ptr.hbm [resolvable:$true] %s324
          %s326 = sshll.u32 %s318, 4
          %s327 = int_to_ptr.vmem [resolvable:$true] %s326
          %332 = dma.hbm_to_vmem [thread:$0]  %s325, 256, %s327, %s315, 64, 64, 4
        $region40: #{tpu_custom_call.1} parent=27 // pred_fallthru
          _
        // Predicated region
        $region41: #{tpu_custom_call.1} parent=27 // pred_check
          %p333 = pneg %p189
        $region42: #{tpu_custom_call.1} parent=27 // pred_check_branch
          %335 = sbr.rel (%p333) target = $region44
        $region43: #{tpu_custom_call.1} parent=27 // pred_region
          %p336 = scmp.lt.s32.totalorder %s28, 1
          %s337 = scalar_select %p336, %s28, 1
          %s338 = smul.addr %s337, 8
          %s339 = smul.addr %s338, 4
          %s340 = scalar_lea.vmem %s7, %s339
        $region44: #{tpu_custom_call.1} parent=27 // pred_fallthru
          _
        // Predicated region
        $region45: #{tpu_custom_call.1} parent=27 // pred_check
          %p341 = pneg %p215
        $region46: #{tpu_custom_call.1} parent=27 // pred_check_branch
          %343 = sbr.rel (%p341) target = $region48
        $region47: #{tpu_custom_call.1} parent=27 // pred_region
          %p344 = scmp.lt.s32.totalorder %s28, 1
          %s345 = scalar_select %p344, %s28, 1
          %s346 = smul.addr %s345, 2
          %s347 = smul.addr %s346, 8
          %s348 = scalar_lea.vmem %s8, %s347
        $region48: #{tpu_custom_call.1} parent=27 // pred_fallthru
          _
      $region28: #{tpu_custom_call.1} parent=5 // pred_fallthru
        _
      %p349 = scmp.le.s32.totalorder 1, %s28
      %p350 = scmp.lt.s32.totalorder %s28, 3
      %p351 = pnand %p349, %p350
      %p352 = pneg %p351
      // Predicated region
      $region49: #{tpu_custom_call.1} parent=5 // pred_check
        _
      $region50: #{tpu_custom_call.1} parent=5 // pred_check_branch
        %354 = sbr.rel (%p351) target = $region52
      $region51: #{tpu_custom_call.1} parent=5 // pred_region
        %s355 = ssub.s32 %s28, 1
        // Predicated region
        $region53: #{tpu_custom_call.1} parent=51 // pred_check
          %p356 = pneg %p91
        $region54: #{tpu_custom_call.1} parent=51 // pred_check_branch
          %358 = sbr.rel (%p356) target = $region56
        $region55: #{tpu_custom_call.1} parent=51 // pred_region
          %360 = dma.done [#allocation7], 256
        $region56: #{tpu_custom_call.1} parent=51 // pred_fallthru
          _
        %s361 = sand.u32 %s33, 1
        %s362 = scalar_lea.sflag [#allocation10], %s361
        %s363 = sand.u32 %s130, 1
        %s364 = smul.addr %s363, 16
        %s365 = scalar_lea.vmem [#allocation9], %s364
        // Predicated region
        $region57: #{tpu_custom_call.1} parent=51 // pred_check
          %p366 = pneg %p143
        $region58: #{tpu_custom_call.1} parent=51 // pred_check_branch
          %368 = sbr.rel (%p366) target = $region60
        $region59: #{tpu_custom_call.1} parent=51 // pred_region
          %370 = dma.done %s362, 256
        $region60: #{tpu_custom_call.1} parent=51 // pred_fallthru
          _
        %s371 = sand.u32 %s33, 1
        %s372 = scalar_lea.sflag [#allocation10], %s371
        %s373 = sand.u32 %s156, 1
        %s374 = smul.addr %s373, 16
        %s375 = scalar_lea.vmem [#allocation11], %s374
        // Predicated region
        $region61: #{tpu_custom_call.1} parent=51 // pred_check
          %p376 = pneg %p169
        $region62: #{tpu_custom_call.1} parent=51 // pred_check_branch
          %378 = sbr.rel (%p376) target = $region64
        $region63: #{tpu_custom_call.1} parent=51 // pred_region
          %380 = dma.done %s372, 256
        $region64: #{tpu_custom_call.1} parent=51 // pred_fallthru
          _
        %p381 = pneg %p49
        %p382 = pneg %p46
        %p383 = pneg %p70
        %p384 = pneg %p67
        %p385 = pneg %p91
        %p386 = pneg %p88
        %p387 = scmp.lt.s32.totalorder %s33, 1
        %s388 = scalar_select %p387, %s33, 1
        %s389 = smul.addr %s388, 12
        %s390 = smul.addr %s389, 4
        %s391 = scalar_lea.vmem %s4, %s390
        %p392 = pneg %p117
        %p393 = pneg %p114
        %s394 = sand.u32 %s33, 1
        %s395 = scalar_lea.sflag [#allocation10], %s394
        %s396 = sand.u32 %s130, 1
        %s397 = smul.addr %s396, 16
        %s398 = scalar_lea.vmem [#allocation9], %s397
        %p399 = pneg %p143
        %p400 = pneg %p140
        %s401 = sand.u32 %s33, 1
        %s402 = scalar_lea.sflag [#allocation10], %s401
        %s403 = sand.u32 %s156, 1
        %s404 = smul.addr %s403, 16
        %s405 = scalar_lea.vmem [#allocation11], %s404
        %p406 = pneg %p169
        %p407 = pneg %p166
        %p408 = scmp.lt.s32.totalorder %s33, 1
        %s409 = scalar_select %p408, %s33, 1
        %s410 = smul.addr %s409, 8
        %s411 = smul.addr %s410, 4
        %s412 = scalar_lea.vmem %s7, %s411
        %p413 = pneg %p195
        %p414 = pneg %p192
        %p415 = scmp.lt.s32.totalorder %s33, 1
        %s416 = scalar_select %p415, %s33, 1
        %s417 = smul.addr %s416, 2
        %s418 = smul.addr %s417, 8
        %s419 = scalar_lea.vmem %s8, %s418
        %p420 = pneg %p221
        %p421 = pneg %p218
        %p422 = pneg %p242
        %p423 = pneg %p239
        %p424 = scmp.lt.s32.totalorder %s33, 1
        %s425 = scalar_select %p424, %s33, 1
        %s426 = smul.addr %s425, 12
        %s427 = smul.addr %s426, 4
        %s428 = scalar_lea.vmem %s4, %s427
        %p429 = scmp.lt.s32.totalorder %s33, 1
        %s430 = scalar_select %p429, %s33, 1
        %s431 = smul.addr %s430, 8
        %s432 = smul.addr %s431, 4
        %s433 = scalar_lea.vmem %s7, %s432
        %p434 = scmp.lt.s32.totalorder %s33, 1
        %s435 = scalar_select %p434, %s33, 1
        %s436 = smul.addr %s435, 2
        %s437 = smul.addr %s436, 8
        %s438 = scalar_lea.vmem %s8, %s437
        %p440 = scmp.eq.s32.totalorder %s33, 0
        // Predicated region
        $region65: #{tpu_custom_call.1} parent=51 // pred_check
          %p441 = pneg %p440
        $region66: #{tpu_custom_call.1} parent=51 // pred_check_branch
          %443 = sbr.rel (%p441) target = $region68
        $region67: #{tpu_custom_call.1} parent=51 // pred_region
          %v444 = vld [vmem:[#allocation6] sm:$0xff]
          %v445 = vld [vmem:[#allocation6 + $0x8] sm:$0x7]
          %v446 = vld [vmem:[%s1] sm:$0xff]
          %v447 = vld [vmem:[%s1 + $0x8] sm:$0xff]
          %v448 = vpack.c.bf16 %v447, %v446
          %v449 = vld [vmem:[%s2] sm:$0xf]
          %v450 = vld [vmem:[%s2 + $0x4] sm:$0xf]
          %v451 = vperm.slane %v445, 0
          %v454 = vunpack.c.l.b16 %v449
          %v455 = vunpack.c.l.b16 %v450
          %v456 = vpack.c.b16 %v455, %v454
          %vm458 = vcmask 130048
          %v460 = vsel %vm458, %v448, 0
          %462 = vmatpush.bf16.msra.mxu0 0
          %463 = vmatpush.bf16.msra.mxu0 0
          %464 = vmatpush.bf16.msra.mxu0 0
          %465 = vmatpush.bf16.msra.mxu0 0
          %466 = vmatpush.bf16.msra.mxu0 0
          %467 = vmatpush.bf16.msra.mxu0 0
          %468 = vmatpush.bf16.msra.mxu0 0
          %469 = vmatpush.bf16.msra.mxu0 %v456
          %470 = vmatmul.bf16.gmra.mxu0 %v460
          %v471 = vpop.f32.mrf.mxu0
          %v472 = vadd.f32 %v451, %v471
          %v473 = vpop.f32.mrf.mxu0
          %v474 = vadd.f32 %v451, %v473
          %475 = vdwg.mxu0
          %vm476 = vcmask 261120
          %v477 = vsel %vm476, %v472, 0.0
          %478 = vadd.xlane.f32.xlu0 %v477
          %v479 = vpop.xlane.xlu0 %478
          %v480 = vsel %vm476, %v474, 0.0
          %481 = vadd.xlane.f32.xlu0 %v480
          %v482 = vpop.xlane.xlu0 %481
          %v483 = vrcp.pop 32.0
          %v484 = vmul.f32 32.0, %v483
          %v485 = vsub.f32 1.0, %v484
          %v486 = vmul.f32 %v483, %v485
          %v487 = vadd.f32 %v483, %v486
          %vm488 = vweird.f32 %v483
          %v489 = vsel %vm488, %v483, %v487
          %v490 = vmul.f32 %v479, %v489
          %v491 = vmul.f32 %v482, %v489
          %v492 = vsub.f32 %v472, %v490
          %v493 = vsub.f32 %v474, %v491
          %v494 = vmul.f32 %v492, %v492
          %v495 = vmul.f32 %v493, %v493
          %v496 = vsel %vm476, %v494, 0.0
          %497 = vadd.xlane.f32.xlu0 %v496
          %v498 = vpop.xlane.xlu0 %497
          %v499 = vsel %vm476, %v495, 0.0
          %500 = vadd.xlane.f32.xlu0 %v499
          %v501 = vpop.xlane.xlu0 %500
          %v502 = vmul.f32 %v498, %v489
          %v503 = vmul.f32 %v501, %v489
          %v504 = vadd.f32 %v502, 1e-05
          %v505 = vadd.f32 %v503, 1e-05
          %v506 = vrsqrt.pop %v504
          %v507 = vmul.f32 %v506, %v504
          %v508 = vmul.f32 %v507, %v506
          %v509 = vmul.f32 0.5, %v508
          %v510 = vsub.f32 1.5, %v509
          %v511 = vmul.f32 %v506, %v510
          %vm512 = vweird.f32 %v504
          %vm513 = vweird.f32 %v506
          %vm514 = vmor %vm512, %vm513
          %v515 = vsel %vm514, %v506, %v511
          %v516 = vrsqrt.pop %v505
          %v517 = vmul.f32 %v516, %v505
          %v518 = vmul.f32 %v517, %v516
          %v519 = vmul.f32 0.5, %v518
          %v520 = vsub.f32 1.5, %v519
          %v521 = vmul.f32 %v516, %v520
          %vm522 = vweird.f32 %v505
          %vm523 = vweird.f32 %v516
          %vm524 = vmor %vm522, %vm523
          %v525 = vsel %vm524, %v516, %v521
          %v526 = vmul.f32 %v492, %v515
          %v527 = vmul.f32 %v493, %v525
          %v528 = vperm.slane %v445, 1
          %v529 = vmul.f32 %v526, %v528
          %v530 = vmul.f32 %v527, %v528
          %v531 = vperm.slane %v445, 2
          %v532 = vadd.f32 %v529, %v531
          %v533 = vadd.f32 %v530, %v531
          %v534 = vadd.f32 %v532, %v444
          %v535 = vadd.f32 %v533, %v444
          %536 = vst.msk [vmem:[#allocation2] sm:$0xff] %vm476, %v534
          %537 = vst.msk [vmem:[#allocation2 + $0x8] sm:$0xff] %vm476, %v535
          %v538 = vlaneseq
          %v539 = vand.u32 %v538, 127
          %s540 = sld [smem:[#allocation5]]
          %v541 = vstv %s540
          %vm542 = vcmp.ge.s32.totalorder %v539, %v541
          %v543 = vsel %vm542, -1e+09, 0.0
          %vm544 = vcmask 57344
          %545 = vst.msk [vmem:[#allocation3] sm:$0x1] %vm544, %v543
          %s546 = sld [smem:[#allocation5 + $0x1]]
          %v547 = vstv %s546
          %vm548 = vcmp.ge.s32.totalorder %v539, %v547
          %v549 = vsel %vm548, -1e+09, 0.0
          %550 = vst.msk [vmem:[#allocation3 + $0x1] sm:$0x1] %vm544, %v549
        $region68: #{tpu_custom_call.1} parent=51 // pred_fallthru
          _
        %v551 = vld [vmem:[%s438] sm:$0xff]
        %v552 = vld [vmem:[%s438 + $0x8] sm:$0x3]
        %v553 = vld [vmem:[#allocation2] sm:$0xff]
        %v554 = vld [vmem:[#allocation2 + $0x8] sm:$0xff]
        %v555 = vpack.c.bf16 %v554, %v553
        %v556 = vld [vmem:[%s428] sm:$0xf]
        %v557 = vld [vmem:[%s428 + $0x4] sm:$0xf]
        %v558 = vld [vmem:[%s428 + $0x8] sm:$0xf]
        %v559 = vld [vmem:[%s428 + $0xc] sm:$0xf]
        %v560 = vld [vmem:[%s428 + $0x10] sm:$0xf]
        %v561 = vld [vmem:[%s428 + $0x14] sm:$0xf]
        %v562 = vld [vmem:[%s428 + $0x18] sm:$0xf]
        %v563 = vld [vmem:[%s428 + $0x1c] sm:$0xf]
        %v564 = vld [vmem:[%s428 + $0x20] sm:$0xf]
        %v565 = vld [vmem:[%s428 + $0x24] sm:$0xf]
        %v566 = vld [vmem:[%s428 + $0x28] sm:$0xf]
        %v567 = vld [vmem:[%s428 + $0x2c] sm:$0xf]
        %v568 = vperm.slane %v551, 0
        %v573 = vunpack.c.l.b16 %v556
        %v574 = vunpack.c.l.b16 %v557
        %v575 = vunpack.c.l.b16 %v558
        %v576 = vunpack.c.l.b16 %v559
        %v577 = vpack.c.b16 %v574, %v573
        %v578 = vpack.c.b16 %v576, %v575
        %vm581 = vcmask 261120
        %v583 = vsel %vm581, %v555, 0
        %585 = vmatpush.bf16.msra.mxu0 0
        %586 = vmatpush.bf16.msra.mxu0 0
        %587 = vmatpush.bf16.msra.mxu0 0
        %588 = vmatpush.bf16.msra.mxu0 0
        %589 = vmatpush.bf16.msra.mxu0 0
        %590 = vmatpush.bf16.msra.mxu0 0
        %591 = vmatpush.bf16.msra.mxu0 %v578
        %592 = vmatpush.bf16.msra.mxu0 %v577
        %593 = vmatmul.bf16.gmra.mxu0 %v583
        %v594 = vpop.f32.mrf.mxu0
        %v595 = vadd.f32 %v568, %v594
        %v596 = vpop.f32.mrf.mxu0
        %v597 = vadd.f32 %v568, %v596
        %598 = vdwg.mxu0
        %v599 = vperm.slane %v551, 1
        %v604 = vunpack.c.l.b16 %v560
        %v605 = vunpack.c.l.b16 %v561
        %v606 = vunpack.c.l.b16 %v562
        %v607 = vunpack.c.l.b16 %v563
        %v608 = vpack.c.b16 %v605, %v604
        %v609 = vpack.c.b16 %v607, %v606
        %612 = vmatpush.bf16.msra.mxu0 0
        %613 = vmatpush.bf16.msra.mxu0 0
        %614 = vmatpush.bf16.msra.mxu0 0
        %615 = vmatpush.bf16.msra.mxu0 0
        %616 = vmatpush.bf16.msra.mxu0 0
        %617 = vmatpush.bf16.msra.mxu0 0
        %618 = vmatpush.bf16.msra.mxu0 %v609
        %619 = vmatpush.bf16.msra.mxu0 %v608
        %620 = vmatmul.bf16.gmra.mxu0 %v583
        %v621 = vpop.f32.mrf.mxu0
        %v622 = vadd.f32 %v599, %v621
        %v623 = vpop.f32.mrf.mxu0
        %v624 = vadd.f32 %v599, %v623
        %625 = vdwg.mxu0
        %v626 = vperm.slane %v551, 2
        %v631 = vunpack.c.l.b16 %v564
        %v632 = vunpack.c.l.b16 %v565
        %v633 = vunpack.c.l.b16 %v566
        %v634 = vunpack.c.l.b16 %v567
        %v635 = vpack.c.b16 %v632, %v631
        %v636 = vpack.c.b16 %v634, %v633
        %639 = vmatpush.bf16.msra.mxu0 0
        %640 = vmatpush.bf16.msra.mxu0 0
        %641 = vmatpush.bf16.msra.mxu0 0
        %642 = vmatpush.bf16.msra.mxu0 0
        %643 = vmatpush.bf16.msra.mxu0 0
        %644 = vmatpush.bf16.msra.mxu0 0
        %645 = vmatpush.bf16.msra.mxu0 %v636
        %646 = vmatpush.bf16.msra.mxu0 %v635
        %647 = vmatmul.bf16.gmra.mxu0 %v583
        %v648 = vpop.f32.mrf.mxu0
        %v649 = vadd.f32 %v626, %v648
        %v650 = vpop.f32.mrf.mxu0
        %v651 = vadd.f32 %v626, %v650
        %652 = vdwg.mxu0
        %v653 = vld [vmem:[#allocation3] sm:$0x3]
        %v655 = vrot.slane %v653, 1
        %v656 = vpack.c.bf16 %v595, %v595
        %v657 = vpack.c.bf16 %v597, %v597
        %v658 = vpack.c.bf16 %v622, %v622
        %v659 = vpack.c.bf16 %v624, %v624
        %v660 = vpack.c.bf16 %v649, %v649
        %v661 = vpack.c.bf16 %v651, %v651
        %v662 = vperm.slane %v653, 0
        %v663 = vperm.slane %v655, 0
        %vm666 = vcmask 64512
        %v668 = vsel %vm666, %v656, 0
        %v671 = vsel %vm666, %v658, 0
        %673 = vmatpush.bf16.xpose.msra.mxu0 0
        %674 = vmatpush.bf16.xpose.msra.mxu0 0
        %675 = vmatpush.bf16.xpose.msra.mxu0 0
        %676 = vmatpush.bf16.xpose.msra.mxu0 0
        %677 = vmatpush.bf16.xpose.msra.mxu0 0
        %678 = vmatpush.bf16.xpose.msra.mxu0 0
        %679 = vmatpush.bf16.xpose.msra.mxu0 0
        %680 = vmatpush.bf16.xpose.msra.mxu0 %v671
        %681 = vmatmul.bf16.gmra.mxu0 %v668
        %v682 = vpop.f32.mrf.mxu0
        %v683 = vadd.f32 %v662, %v682
        %v684 = vpop.f32.mrf.mxu0
        %685 = vdwg.mxu0
        %v687 = vsel %vm666, %v657, 0
        %v690 = vsel %vm666, %v659, 0
        %692 = vmatpush.bf16.xpose.msra.mxu0 0
        %693 = vmatpush.bf16.xpose.msra.mxu0 0
        %694 = vmatpush.bf16.xpose.msra.mxu0 0
        %695 = vmatpush.bf16.xpose.msra.mxu0 0
        %696 = vmatpush.bf16.xpose.msra.mxu0 0
        %697 = vmatpush.bf16.xpose.msra.mxu0 0
        %698 = vmatpush.bf16.xpose.msra.mxu0 0
        %699 = vmatpush.bf16.xpose.msra.mxu0 %v690
        %700 = vmatmul.bf16.gmra.mxu0 %v687
        %v701 = vpop.f32.mrf.mxu0
        %v702 = vadd.f32 %v663, %v701
        %v703 = vpop.f32.mrf.mxu0
        %704 = vdwg.mxu0
        %v705 = vsel %vm666, %v683, -inf
        %706 = vmax.xlane.f32.xlu0 %v705
        %v707 = vpop.xlane.xlu0 %706
        %v708 = vsel %vm666, %v702, -inf
        %709 = vmax.xlane.f32.xlu0 %v708
        %v710 = vpop.xlane.xlu0 %709
        %v711 = vsub.f32 %v683, %v707
        %v712 = vsub.f32 %v702, %v710
        %v713 = vmul.f32 %v711, 1.442695
        %v714 = vpow.pop %v713
        %v715 = vmul.f32 %v712, 1.442695
        %v716 = vpow.pop %v715
        %v717 = vsel %vm666, %v714, 0.0
        %718 = vadd.xlane.f32.xlu0 %v717
        %v719 = vpop.xlane.xlu0 %718
        %v720 = vsel %vm666, %v716, 0.0
        %721 = vadd.xlane.f32.xlu0 %v720
        %v722 = vpop.xlane.xlu0 %721
        %v723 = vrcp.pop %v719
        %v724 = vrcp.pop %v722
        %v725 = vmul.f32 %v714, %v723
        %v726 = vmul.f32 %v716, %v724
        %v727 = vpack.c.bf16 %v725, %v725
        %v728 = vpack.c.bf16 %v726, %v726
        %v730 = vsel %vm666, %v727, 0
        %vm732 = vcmask 1043456
        %v734 = vsel %vm732, %v660, 0
        %736 = vmatpush.bf16.msra.mxu0 0
        %737 = vmatpush.bf16.msra.mxu0 0
        %738 = vmatpush.bf16.msra.mxu0 0
        %739 = vmatpush.bf16.msra.mxu0 0
        %740 = vmatpush.bf16.msra.mxu0 0
        %741 = vmatpush.bf16.msra.mxu0 0
        %742 = vmatpush.bf16.msra.mxu0 0
        %743 = vmatpush.bf16.msra.mxu0 %v734
        %744 = vmatmul.bf16.gmra.mxu0 %v730
        %v745 = vpop.f32.mrf.mxu0
        %v746 = vadd.f32 0.0, %v745
        %v747 = vpop.f32.mrf.mxu0
        %748 = vdwg.mxu0
        %v750 = vsel %vm666, %v728, 0
        %v753 = vsel %vm732, %v661, 0
        %755 = vmatpush.bf16.msra.mxu0 0
        %756 = vmatpush.bf16.msra.mxu0 0
        %757 = vmatpush.bf16.msra.mxu0 0
        %758 = vmatpush.bf16.msra.mxu0 0
        %759 = vmatpush.bf16.msra.mxu0 0
        %760 = vmatpush.bf16.msra.mxu0 0
        %761 = vmatpush.bf16.msra.mxu0 0
        %762 = vmatpush.bf16.msra.mxu0 %v753
        %763 = vmatmul.bf16.gmra.mxu0 %v750
        %v764 = vpop.f32.mrf.mxu0
        %v765 = vadd.f32 0.0, %v764
        %v766 = vpop.f32.mrf.mxu0
        %767 = vdwg.mxu0
        %v769 = vunpack.c.l.b16 %v656
        %v770 = vpack.c.b16 %v769, %v769
        %771 = vrot.lane.b32.xlu0 %v770, 120
        %v772 = vpop.permute.xlu0 %771
        %v774 = vunpack.c.l.b16 %v658
        %v775 = vpack.c.b16 %v774, %v774
        %776 = vrot.lane.b32.xlu0 %v775, 120
        %v777 = vpop.permute.xlu0 %776
        %v779 = vsel %vm666, %v772, 0
        %v782 = vsel %vm666, %v777, 0
        %784 = vmatpush.bf16.xpose.msra.mxu0 0
        %785 = vmatpush.bf16.xpose.msra.mxu0 0
        %786 = vmatpush.bf16.xpose.msra.mxu0 0
        %787 = vmatpush.bf16.xpose.msra.mxu0 0
        %788 = vmatpush.bf16.xpose.msra.mxu0 0
        %789 = vmatpush.bf16.xpose.msra.mxu0 0
        %790 = vmatpush.bf16.xpose.msra.mxu0 0
        %791 = vmatpush.bf16.xpose.msra.mxu0 %v782
        %792 = vmatmul.bf16.gmra.mxu0 %v779
        %v793 = vpop.f32.mrf.mxu0
        %v794 = vadd.f32 %v662, %v793
        %v795 = vpop.f32.mrf.mxu0
        %796 = vdwg.mxu0
        %v798 = vunpack.c.l.b16 %v657
        %v799 = vpack.c.b16 %v798, %v798
        %800 = vrot.lane.b32.xlu0 %v799, 120
        %v801 = vpop.permute.xlu0 %800
        %v803 = vunpack.c.l.b16 %v659
        %v804 = vpack.c.b16 %v803, %v803
        %805 = vrot.lane.b32.xlu0 %v804, 120
        %v806 = vpop.permute.xlu0 %805
        %v808 = vsel %vm666, %v801, 0
        %v811 = vsel %vm666, %v806, 0
        %813 = vmatpush.bf16.xpose.msra.mxu0 0
        %814 = vmatpush.bf16.xpose.msra.mxu0 0
        %815 = vmatpush.bf16.xpose.msra.mxu0 0
        %816 = vmatpush.bf16.xpose.msra.mxu0 0
        %817 = vmatpush.bf16.xpose.msra.mxu0 0
        %818 = vmatpush.bf16.xpose.msra.mxu0 0
        %819 = vmatpush.bf16.xpose.msra.mxu0 0
        %820 = vmatpush.bf16.xpose.msra.mxu0 %v811
        %821 = vmatmul.bf16.gmra.mxu0 %v808
        %v822 = vpop.f32.mrf.mxu0
        %v823 = vadd.f32 %v663, %v822
        %v824 = vpop.f32.mrf.mxu0
        %825 = vdwg.mxu0
        %v826 = vsel %vm666, %v794, -inf
        %827 = vmax.xlane.f32.xlu0 %v826
        %v828 = vpop.xlane.xlu0 %827
        %v829 = vsel %vm666, %v823, -inf
        %830 = vmax.xlane.f32.xlu0 %v829
        %v831 = vpop.xlane.xlu0 %830
        %v832 = vsub.f32 %v794, %v828
        %v833 = vsub.f32 %v823, %v831
        %v834 = vmul.f32 %v832, 1.442695
        %v835 = vpow.pop %v834
        %v836 = vmul.f32 %v833, 1.442695
        %v837 = vpow.pop %v836
        %v838 = vsel %vm666, %v835, 0.0
        %839 = vadd.xlane.f32.xlu0 %v838
        %v840 = vpop.xlane.xlu0 %839
        %v841 = vsel %vm666, %v837, 0.0
        %842 = vadd.xlane.f32.xlu0 %v841
        %v843 = vpop.xlane.xlu0 %842
        %v844 = vrcp.pop %v840
        %v845 = vrcp.pop %v843
        %v846 = vmul.f32 %v835, %v844
        %v847 = vmul.f32 %v837, %v845
        %v848 = vpack.c.bf16 %v846, %v846
        %v849 = vpack.c.bf16 %v847, %v847
        %v851 = vunpack.c.l.b16 %v660
        %v852 = vpack.c.b16 %v851, %v851
        %853 = vrot.lane.b32.xlu0 %v852, 120
        %v854 = vpop.permute.xlu0 %853
        %v856 = vsel %vm666, %v848, 0
        %v859 = vsel %vm732, %v854, 0
        %861 = vmatpush.bf16.msra.mxu0 0
        %862 = vmatpush.bf16.msra.mxu0 0
        %863 = vmatpush.bf16.msra.mxu0 0
        %864 = vmatpush.bf16.msra.mxu0 0
        %865 = vmatpush.bf16.msra.mxu0 0
        %866 = vmatpush.bf16.msra.mxu0 0
        %867 = vmatpush.bf16.msra.mxu0 0
        %868 = vmatpush.bf16.msra.mxu0 %v859
        %869 = vmatmul.bf16.gmra.mxu0 %v856
        %v870 = vpop.f32.mrf.mxu0
        %v871 = vadd.f32 0.0, %v870
        %v872 = vpop.f32.mrf.mxu0
        %873 = vdwg.mxu0
        %v875 = vunpack.c.l.b16 %v661
        %v876 = vpack.c.b16 %v875, %v875
        %877 = vrot.lane.b32.xlu0 %v876, 120
        %v878 = vpop.permute.xlu0 %877
        %v880 = vsel %vm666, %v849, 0
        %v883 = vsel %vm732, %v878, 0
        %885 = vmatpush.bf16.msra.mxu0 0
        %886 = vmatpush.bf16.msra.mxu0 0
        %887 = vmatpush.bf16.msra.mxu0 0
        %888 = vmatpush.bf16.msra.mxu0 0
        %889 = vmatpush.bf16.msra.mxu0 0
        %890 = vmatpush.bf16.msra.mxu0 0
        %891 = vmatpush.bf16.msra.mxu0 0
        %892 = vmatpush.bf16.msra.mxu0 %v883
        %893 = vmatmul.bf16.gmra.mxu0 %v880
        %v894 = vpop.f32.mrf.mxu0
        %v895 = vadd.f32 0.0, %v894
        %v896 = vpop.f32.mrf.mxu0
        %897 = vdwg.mxu0
        %898 = vrot.lane.b32.xlu0 %v770, 112
        %v899 = vpop.permute.xlu0 %898
        %900 = vrot.lane.b32.xlu0 %v775, 112
        %v901 = vpop.permute.xlu0 %900
        %v903 = vsel %vm666, %v899, 0
        %v906 = vsel %vm666, %v901, 0
        %908 = vmatpush.bf16.xpose.msra.mxu0 0
        %909 = vmatpush.bf16.xpose.msra.mxu0 0
        %910 = vmatpush.bf16.xpose.msra.mxu0 0
        %911 = vmatpush.bf16.xpose.msra.mxu0 0
        %912 = vmatpush.bf16.xpose.msra.mxu0 0
        %913 = vmatpush.bf16.xpose.msra.mxu0 0
        %914 = vmatpush.bf16.xpose.msra.mxu0 0
        %915 = vmatpush.bf16.xpose.msra.mxu0 %v906
        %916 = vmatmul.bf16.gmra.mxu0 %v903
        %v917 = vpop.f32.mrf.mxu0
        %v918 = vadd.f32 %v662, %v917
        %v919 = vpop.f32.mrf.mxu0
        %920 = vdwg.mxu0
        %921 = vrot.lane.b32.xlu0 %v799, 112
        %v922 = vpop.permute.xlu0 %921
        %923 = vrot.lane.b32.xlu0 %v804, 112
        %v924 = vpop.permute.xlu0 %923
        %v926 = vsel %vm666, %v922, 0
        %v929 = vsel %vm666, %v924, 0
        %931 = vmatpush.bf16.xpose.msra.mxu0 0
        %932 = vmatpush.bf16.xpose.msra.mxu0 0
        %933 = vmatpush.bf16.xpose.msra.mxu0 0
        %934 = vmatpush.bf16.xpose.msra.mxu0 0
        %935 = vmatpush.bf16.xpose.msra.mxu0 0
        %936 = vmatpush.bf16.xpose.msra.mxu0 0
        %937 = vmatpush.bf16.xpose.msra.mxu0 0
        %938 = vmatpush.bf16.xpose.msra.mxu0 %v929
        %939 = vmatmul.bf16.gmra.mxu0 %v926
        %v940 = vpop.f32.mrf.mxu0
        %v941 = vadd.f32 %v663, %v940
        %v942 = vpop.f32.mrf.mxu0
        %943 = vdwg.mxu0
        %v944 = vsel %vm666, %v918, -inf
        %945 = vmax.xlane.f32.xlu0 %v944
        %v946 = vpop.xlane.xlu0 %945
        %v947 = vsel %vm666, %v941, -inf
        %948 = vmax.xlane.f32.xlu0 %v947
        %v949 = vpop.xlane.xlu0 %948
        %v950 = vsub.f32 %v918, %v946
        %v951 = vsub.f32 %v941, %v949
        %v952 = vmul.f32 %v950, 1.442695
        %v953 = vpow.pop %v952
        %v954 = vmul.f32 %v951, 1.442695
        %v955 = vpow.pop %v954
        %v956 = vsel %vm666, %v953, 0.0
        %957 = vadd.xlane.f32.xlu0 %v956
        %v958 = vpop.xlane.xlu0 %957
        %v959 = vsel %vm666, %v955, 0.0
        %960 = vadd.xlane.f32.xlu0 %v959
        %v961 = vpop.xlane.xlu0 %960
        %v962 = vrcp.pop %v958
        %v963 = vrcp.pop %v961
        %v964 = vmul.f32 %v953, %v962
        %v965 = vmul.f32 %v955, %v963
        %v966 = vpack.c.bf16 %v964, %v964
        %v967 = vpack.c.bf16 %v965, %v965
        %968 = vrot.lane.b32.xlu0 %v852, 112
        %v969 = vpop.permute.xlu0 %968
        %v971 = vsel %vm666, %v966, 0
        %v974 = vsel %vm732, %v969, 0
        %976 = vmatpush.bf16.msra.mxu0 0
        %977 = vmatpush.bf16.msra.mxu0 0
        %978 = vmatpush.bf16.msra.mxu0 0
        %979 = vmatpush.bf16.msra.mxu0 0
        %980 = vmatpush.bf16.msra.mxu0 0
        %981 = vmatpush.bf16.msra.mxu0 0
        %982 = vmatpush.bf16.msra.mxu0 0
        %983 = vmatpush.bf16.msra.mxu0 %v974
        %984 = vmatmul.bf16.gmra.mxu0 %v971
        %v985 = vpop.f32.mrf.mxu0
        %v986 = vadd.f32 0.0, %v985
        %v987 = vpop.f32.mrf.mxu0
        %988 = vdwg.mxu0
        %989 = vrot.lane.b32.xlu0 %v876, 112
        %v990 = vpop.permute.xlu0 %989
        %v992 = vsel %vm666, %v967, 0
        %v995 = vsel %vm732, %v990, 0
        %997 = vmatpush.bf16.msra.mxu0 0
        %998 = vmatpush.bf16.msra.mxu0 0
        %999 = vmatpush.bf16.msra.mxu0 0
        %1000 = vmatpush.bf16.msra.mxu0 0
        %1001 = vmatpush.bf16.msra.mxu0 0
        %1002 = vmatpush.bf16.msra.mxu0 0
        %1003 = vmatpush.bf16.msra.mxu0 0
        %1004 = vmatpush.bf16.msra.mxu0 %v995
        %1005 = vmatmul.bf16.gmra.mxu0 %v992
        %v1006 = vpop.f32.mrf.mxu0
        %v1007 = vadd.f32 0.0, %v1006
        %v1008 = vpop.f32.mrf.mxu0
        %1009 = vdwg.mxu0
        %1010 = vrot.lane.b32.xlu0 %v770, 104
        %v1011 = vpop.permute.xlu0 %1010
        %1012 = vrot.lane.b32.xlu0 %v775, 104
        %v1013 = vpop.permute.xlu0 %1012
        %v1015 = vsel %vm666, %v1011, 0
        %v1018 = vsel %vm666, %v1013, 0
        %1020 = vmatpush.bf16.xpose.msra.mxu0 0
        %1021 = vmatpush.bf16.xpose.msra.mxu0 0
        %1022 = vmatpush.bf16.xpose.msra.mxu0 0
        %1023 = vmatpush.bf16.xpose.msra.mxu0 0
        %1024 = vmatpush.bf16.xpose.msra.mxu0 0
        %1025 = vmatpush.bf16.xpose.msra.mxu0 0
        %1026 = vmatpush.bf16.xpose.msra.mxu0 0
        %1027 = vmatpush.bf16.xpose.msra.mxu0 %v1018
        %1028 = vmatmul.bf16.gmra.mxu0 %v1015
        %v1029 = vpop.f32.mrf.mxu0
        %v1030 = vadd.f32 %v662, %v1029
        %v1031 = vpop.f32.mrf.mxu0
        %1032 = vdwg.mxu0
        %1033 = vrot.lane.b32.xlu0 %v799, 104
        %v1034 = vpop.permute.xlu0 %1033
        %1035 = vrot.lane.b32.xlu0 %v804, 104
        %v1036 = vpop.permute.xlu0 %1035
        %v1038 = vsel %vm666, %v1034, 0
        %v1041 = vsel %vm666, %v1036, 0
        %1043 = vmatpush.bf16.xpose.msra.mxu0 0
        %1044 = vmatpush.bf16.xpose.msra.mxu0 0
        %1045 = vmatpush.bf16.xpose.msra.mxu0 0
        %1046 = vmatpush.bf16.xpose.msra.mxu0 0
        %1047 = vmatpush.bf16.xpose.msra.mxu0 0
        %1048 = vmatpush.bf16.xpose.msra.mxu0 0
        %1049 = vmatpush.bf16.xpose.msra.mxu0 0
        %1050 = vmatpush.bf16.xpose.msra.mxu0 %v1041
        %1051 = vmatmul.bf16.gmra.mxu0 %v1038
        %v1052 = vpop.f32.mrf.mxu0
        %v1053 = vadd.f32 %v663, %v1052
        %v1054 = vpop.f32.mrf.mxu0
        %1055 = vdwg.mxu0
        %v1056 = vsel %vm666, %v1030, -inf
        %1057 = vmax.xlane.f32.xlu0 %v1056
        %v1058 = vpop.xlane.xlu0 %1057
        %v1059 = vsel %vm666, %v1053, -inf
        %1060 = vmax.xlane.f32.xlu0 %v1059
        %v1061 = vpop.xlane.xlu0 %1060
        %v1062 = vsub.f32 %v1030, %v1058
        %v1063 = vsub.f32 %v1053, %v1061
        %v1064 = vmul.f32 %v1062, 1.442695
        %v1065 = vpow.pop %v1064
        %v1066 = vmul.f32 %v1063, 1.442695
        %v1067 = vpow.pop %v1066
        %v1068 = vsel %vm666, %v1065, 0.0
        %1069 = vadd.xlane.f32.xlu0 %v1068
        %v1070 = vpop.xlane.xlu0 %1069
        %v1071 = vsel %vm666, %v1067, 0.0
        %1072 = vadd.xlane.f32.xlu0 %v1071
        %v1073 = vpop.xlane.xlu0 %1072
        %v1074 = vrcp.pop %v1070
        %v1075 = vrcp.pop %v1073
        %v1076 = vmul.f32 %v1065, %v1074
        %v1077 = vmul.f32 %v1067, %v1075
        %v1078 = vpack.c.bf16 %v1076, %v1076
        %v1079 = vpack.c.bf16 %v1077, %v1077
        %1080 = vrot.lane.b32.xlu0 %v852, 104
        %v1081 = vpop.permute.xlu0 %1080
        %v1083 = vsel %vm666, %v1078, 0
        %v1086 = vsel %vm732, %v1081, 0
        %1088 = vmatpush.bf16.msra.mxu0 0
        %1089 = vmatpush.bf16.msra.mxu0 0
        %1090 = vmatpush.bf16.msra.mxu0 0
        %1091 = vmatpush.bf16.msra.mxu0 0
        %1092 = vmatpush.bf16.msra.mxu0 0
        %1093 = vmatpush.bf16.msra.mxu0 0
        %1094 = vmatpush.bf16.msra.mxu0 0
        %1095 = vmatpush.bf16.msra.mxu0 %v1086
        %1096 = vmatmul.bf16.gmra.mxu0 %v1083
        %v1097 = vpop.f32.mrf.mxu0
        %v1098 = vadd.f32 0.0, %v1097
        %v1099 = vpop.f32.mrf.mxu0
        %1100 = vdwg.mxu0
        %1101 = vrot.lane.b32.xlu0 %v876, 104
        %v1102 = vpop.permute.xlu0 %1101
        %v1104 = vsel %vm666, %v1079, 0
        %v1107 = vsel %vm732, %v1102, 0
        %1109 = vmatpush.bf16.msra.mxu0 0
        %1110 = vmatpush.bf16.msra.mxu0 0
        %1111 = vmatpush.bf16.msra.mxu0 0
        %1112 = vmatpush.bf16.msra.mxu0 0
        %1113 = vmatpush.bf16.msra.mxu0 0
        %1114 = vmatpush.bf16.msra.mxu0 0
        %1115 = vmatpush.bf16.msra.mxu0 0
        %1116 = vmatpush.bf16.msra.mxu0 %v1107
        %1117 = vmatmul.bf16.gmra.mxu0 %v1104
        %v1118 = vpop.f32.mrf.mxu0
        %v1119 = vadd.f32 0.0, %v1118
        %v1120 = vpop.f32.mrf.mxu0
        %1121 = vdwg.mxu0
        %1124 = vrot.lane.b32.xlu0 %v871, 8
        %v1125 = vpop.permute.xlu0 %1124
        %1126 = vrot.lane.b32.xlu0 %v895, 8
        %v1127 = vpop.permute.xlu0 %1126
        %1132 = vrot.lane.b32.xlu0 %v986, 16
        %v1133 = vpop.permute.xlu0 %1132
        %1134 = vrot.lane.b32.xlu0 %v1007, 16
        %v1135 = vpop.permute.xlu0 %1134
        %1140 = vrot.lane.b32.xlu0 %v1098, 24
        %v1141 = vpop.permute.xlu0 %1140
        %1142 = vrot.lane.b32.xlu0 %v1119, 24
        %v1143 = vpop.permute.xlu0 %1142
        %v1146 = vsel %vm666, %v746, %v1125
        %v1147 = vsel %vm666, %v765, %v1127
        %vm1148 = vcmask 130048
        %v1149 = vsel %vm1148, %v1146, %v1133
        %v1150 = vsel %vm1148, %v1147, %v1135
        %vm1151 = vcmask 195584
        %v1152 = vsel %vm1151, %v1149, %v1141
        %v1153 = vsel %vm1151, %v1150, %v1143
        %v1154 = vpack.c.bf16 %v1153, %v1152
        %v1155 = vld [vmem:[%s365] sm:$0xf]
        %v1156 = vld [vmem:[%s365 + $0x4] sm:$0xf]
        %v1157 = vld [vmem:[%s365 + $0x8] sm:$0xf]
        %v1158 = vld [vmem:[%s365 + $0xc] sm:$0xf]
        %v1159 = vperm.slane %v551, 3
        %v1164 = vunpack.c.l.b16 %v1155
        %v1165 = vunpack.c.l.b16 %v1156
        %v1166 = vunpack.c.l.b16 %v1157
        %v1167 = vunpack.c.l.b16 %v1158
        %v1168 = vpack.c.b16 %v1165, %v1164
        %v1169 = vpack.c.b16 %v1167, %v1166
        %v1173 = vsel %vm581, %v1154, 0
        %1175 = vmatpush.bf16.msra.mxu0 0
        %1176 = vmatpush.bf16.msra.mxu0 0
        %1177 = vmatpush.bf16.msra.mxu0 0
        %1178 = vmatpush.bf16.msra.mxu0 0
        %1179 = vmatpush.bf16.msra.mxu0 0
        %1180 = vmatpush.bf16.msra.mxu0 0
        %1181 = vmatpush.bf16.msra.mxu0 %v1169
        %1182 = vmatpush.bf16.msra.mxu0 %v1168
        %1183 = vmatmul.bf16.gmra.mxu0 %v1173
        %v1184 = vpop.f32.mrf.mxu0
        %v1185 = vadd.f32 %v1159, %v1184
        %v1186 = vpop.f32.mrf.mxu0
        %v1187 = vadd.f32 %v1159, %v1186
        %1188 = vdwg.mxu0
        %v1189 = vadd.f32 %v1185, %v553
        %v1190 = vadd.f32 %v1187, %v554
        %v1191 = vsel %vm581, %v1189, 0.0
        %1192 = vadd.xlane.f32.xlu0 %v1191
        %v1193 = vpop.xlane.xlu0 %1192
        %v1194 = vsel %vm581, %v1190, 0.0
        %1195 = vadd.xlane.f32.xlu0 %v1194
        %v1196 = vpop.xlane.xlu0 %1195
        %v1197 = vrcp.pop 32.0
        %v1198 = vmul.f32 32.0, %v1197
        %v1199 = vsub.f32 1.0, %v1198
        %v1200 = vmul.f32 %v1197, %v1199
        %v1201 = vadd.f32 %v1197, %v1200
        %vm1202 = vweird.f32 %v1197
        %v1203 = vsel %vm1202, %v1197, %v1201
        %v1204 = vmul.f32 %v1193, %v1203
        %v1205 = vmul.f32 %v1196, %v1203
        %v1206 = vsub.f32 %v1189, %v1204
        %v1207 = vsub.f32 %v1190, %v1205
        %v1208 = vmul.f32 %v1206, %v1206
        %v1209 = vmul.f32 %v1207, %v1207
        %v1210 = vsel %vm581, %v1208, 0.0
        %1211 = vadd.xlane.f32.xlu0 %v1210
        %v1212 = vpop.xlane.xlu0 %1211
        %v1213 = vsel %vm581, %v1209, 0.0
        %1214 = vadd.xlane.f32.xlu0 %v1213
        %v1215 = vpop.xlane.xlu0 %1214
        %v1216 = vmul.f32 %v1212, %v1203
        %v1217 = vmul.f32 %v1215, %v1203
        %v1218 = vadd.f32 %v1216, 1e-05
        %v1219 = vadd.f32 %v1217, 1e-05
        %v1220 = vrsqrt.pop %v1218
        %v1221 = vmul.f32 %v1220, %v1218
        %v1222 = vmul.f32 %v1221, %v1220
        %v1223 = vmul.f32 0.5, %v1222
        %v1224 = vsub.f32 1.5, %v1223
        %v1225 = vmul.f32 %v1220, %v1224
        %vm1226 = vweird.f32 %v1218
        %vm1227 = vweird.f32 %v1220
        %vm1228 = vmor %vm1226, %vm1227
        %v1229 = vsel %vm1228, %v1220, %v1225
        %v1230 = vrsqrt.pop %v1219
        %v1231 = vmul.f32 %v1230, %v1219
        %v1232 = vmul.f32 %v1231, %v1230
        %v1233 = vmul.f32 0.5, %v1232
        %v1234 = vsub.f32 1.5, %v1233
        %v1235 = vmul.f32 %v1230, %v1234
        %vm1236 = vweird.f32 %v1219
        %vm1237 = vweird.f32 %v1230
        %vm1238 = vmor %vm1236, %vm1237
        %v1239 = vsel %vm1238, %v1230, %v1235
        %v1240 = vmul.f32 %v1206, %v1229
        %v1241 = vmul.f32 %v1207, %v1239
        %v1242 = vperm.slane %v551, 6
        %v1243 = vmul.f32 %v1240, %v1242
        %v1244 = vmul.f32 %v1241, %v1242
        %v1245 = vperm.slane %v551, 7
        %v1246 = vadd.f32 %v1243, %v1245
        %v1247 = vadd.f32 %v1244, %v1245
        %v1248 = vpack.c.bf16 %v1247, %v1246
        %v1249 = vld [vmem:[%s375] sm:$0xf]
        %v1250 = vld [vmem:[%s375 + $0x4] sm:$0xf]
        %v1251 = vld [vmem:[%s375 + $0x8] sm:$0xf]
        %v1252 = vld [vmem:[%s375 + $0xc] sm:$0xf]
        %v1253 = vperm.slane %v551, 4
        %v1258 = vunpack.c.l.b16 %v1249
        %v1259 = vunpack.c.l.b16 %v1250
        %v1260 = vunpack.c.l.b16 %v1251
        %v1261 = vunpack.c.l.b16 %v1252
        %v1262 = vpack.c.b16 %v1259, %v1258
        %v1263 = vpack.c.b16 %v1261, %v1260
        %v1267 = vsel %vm581, %v1248, 0
        %1269 = vmatpush.bf16.msra.mxu0 0
        %1270 = vmatpush.bf16.msra.mxu0 0
        %1271 = vmatpush.bf16.msra.mxu0 0
        %1272 = vmatpush.bf16.msra.mxu0 0
        %1273 = vmatpush.bf16.msra.mxu0 0
        %1274 = vmatpush.bf16.msra.mxu0 0
        %1275 = vmatpush.bf16.msra.mxu0 %v1263
        %1276 = vmatpush.bf16.msra.mxu0 %v1262
        %1277 = vmatmul.bf16.gmra.mxu0 %v1267
        %v1278 = vpop.f32.mrf.mxu0
        %v1279 = vadd.f32 %v1253, %v1278
        %v1280 = vpop.f32.mrf.mxu0
        %v1281 = vadd.f32 %v1253, %v1280
        %1282 = vdwg.mxu0
        %v1283 = vmax.f32 %v1279, 0.0
        %v1284 = vmax.f32 %v1281, 0.0
        %v1285 = vpack.c.bf16 %v1284, %v1283
        %v1286 = vld [vmem:[%s433] sm:$0xf]
        %v1287 = vld [vmem:[%s433 + $0x4] sm:$0xf]
        %v1288 = vld [vmem:[%s433 + $0x8] sm:$0xf]
        %v1289 = vld [vmem:[%s433 + $0xc] sm:$0xf]
        %v1290 = vld [vmem:[%s433 + $0x10] sm:$0xf]
        %v1291 = vld [vmem:[%s433 + $0x14] sm:$0xf]
        %v1292 = vld [vmem:[%s433 + $0x18] sm:$0xf]
        %v1293 = vld [vmem:[%s433 + $0x1c] sm:$0xf]
        %v1294 = vperm.slane %v551, 5
        %v1303 = vunpack.c.l.b16 %v1286
        %v1304 = vunpack.c.l.b16 %v1287
        %v1305 = vunpack.c.l.b16 %v1288
        %v1306 = vunpack.c.l.b16 %v1289
        %v1307 = vunpack.c.l.b16 %v1290
        %v1308 = vunpack.c.l.b16 %v1291
        %v1309 = vunpack.c.l.b16 %v1292
        %v1310 = vunpack.c.l.b16 %v1293
        %v1311 = vpack.c.b16 %v1304, %v1303
        %v1312 = vpack.c.b16 %v1306, %v1305
        %v1313 = vpack.c.b16 %v1308, %v1307
        %v1314 = vpack.c.b16 %v1310, %v1309
        %vm1319 = vcmask 523264
        %v1321 = vsel %vm1319, %v1285, 0
        %1323 = vmatpush.bf16.msra.mxu0 0
        %1324 = vmatpush.bf16.msra.mxu0 0
        %1325 = vmatpush.bf16.msra.mxu0 0
        %1326 = vmatpush.bf16.msra.mxu0 0
        %1327 = vmatpush.bf16.msra.mxu0 %v1314
        %1328 = vmatpush.bf16.msra.mxu0 %v1313
        %1329 = vmatpush.bf16.msra.mxu0 %v1312
        %1330 = vmatpush.bf16.msra.mxu0 %v1311
        %1331 = vmatmul.bf16.gmra.mxu0 %v1321
        %v1332 = vpop.f32.mrf.mxu0
        %v1333 = vadd.f32 %v1294, %v1332
        %v1334 = vpop.f32.mrf.mxu0
        %v1335 = vadd.f32 %v1294, %v1334
        %1336 = vdwg.mxu0
        %v1337 = vadd.f32 %v1333, %v1246
        %v1338 = vadd.f32 %v1335, %v1247
        %v1339 = vsel %vm581, %v1337, 0.0
        %1340 = vadd.xlane.f32.xlu0 %v1339
        %v1341 = vpop.xlane.xlu0 %1340
        %v1342 = vsel %vm581, %v1338, 0.0
        %1343 = vadd.xlane.f32.xlu0 %v1342
        %v1344 = vpop.xlane.xlu0 %1343
        %v1345 = vmul.f32 %v1341, %v1203
        %v1346 = vmul.f32 %v1344, %v1203
        %v1347 = vsub.f32 %v1337, %v1345
        %v1348 = vsub.f32 %v1338, %v1346
        %v1349 = vmul.f32 %v1347, %v1347
        %v1350 = vmul.f32 %v1348, %v1348
        %v1351 = vsel %vm581, %v1349, 0.0
        %1352 = vadd.xlane.f32.xlu0 %v1351
        %v1353 = vpop.xlane.xlu0 %1352
        %v1354 = vsel %vm581, %v1350, 0.0
        %1355 = vadd.xlane.f32.xlu0 %v1354
        %v1356 = vpop.xlane.xlu0 %1355
        %v1357 = vmul.f32 %v1353, %v1203
        %v1358 = vmul.f32 %v1356, %v1203
        %v1359 = vadd.f32 %v1357, 1e-05
        %v1360 = vadd.f32 %v1358, 1e-05
        %v1361 = vrsqrt.pop %v1359
        %v1362 = vmul.f32 %v1361, %v1359
        %v1363 = vmul.f32 %v1362, %v1361
        %v1364 = vmul.f32 0.5, %v1363
        %v1365 = vsub.f32 1.5, %v1364
        %v1366 = vmul.f32 %v1361, %v1365
        %vm1367 = vweird.f32 %v1359
        %vm1368 = vweird.f32 %v1361
        %vm1369 = vmor %vm1367, %vm1368
        %v1370 = vsel %vm1369, %v1361, %v1366
        %v1371 = vrsqrt.pop %v1360
        %v1372 = vmul.f32 %v1371, %v1360
        %v1373 = vmul.f32 %v1372, %v1371
        %v1374 = vmul.f32 0.5, %v1373
        %v1375 = vsub.f32 1.5, %v1374
        %v1376 = vmul.f32 %v1371, %v1375
        %vm1377 = vweird.f32 %v1360
        %vm1378 = vweird.f32 %v1371
        %vm1379 = vmor %vm1377, %vm1378
        %v1380 = vsel %vm1379, %v1371, %v1376
        %v1381 = vmul.f32 %v1347, %v1370
        %v1382 = vmul.f32 %v1348, %v1380
        %v1383 = vperm.slane %v552, 0
        %v1384 = vmul.f32 %v1381, %v1383
        %v1385 = vmul.f32 %v1382, %v1383
        %v1386 = vperm.slane %v552, 1
        %v1387 = vadd.f32 %v1384, %v1386
        %v1388 = vadd.f32 %v1385, %v1386
        %1389 = vst.msk [vmem:[#allocation2] sm:$0xff] %vm581, %v1387
        %1390 = vst.msk [vmem:[#allocation2 + $0x8] sm:$0xff] %vm581, %v1388
        %p1391 = scmp.eq.s32.totalorder %s33, 1
        // Predicated region
        $region69: #{tpu_custom_call.1} parent=51 // pred_check
          %p1392 = pneg %p1391
        $region70: #{tpu_custom_call.1} parent=51 // pred_check_branch
          %1394 = sbr.rel (%p1392) target = $region72
        $region71: #{tpu_custom_call.1} parent=51 // pred_region
          %1395 = vst.msk [vmem:[#allocation12] sm:$0xff] %vm581, %v1387
          %1396 = vst.msk [vmem:[#allocation12 + $0x8] sm:$0xff] %vm581, %v1388
        $region72: #{tpu_custom_call.1} parent=51 // pred_fallthru
          _
        // Predicated region
        $region73: #{tpu_custom_call.1} parent=51 // pred_check
          %p1397 = pneg %p239
        $region74: #{tpu_custom_call.1} parent=51 // pred_check_branch
          %1399 = sbr.rel (%p1397) target = $region76
        $region75: #{tpu_custom_call.1} parent=51 // pred_region
          %1401 = vsyncadd [#allocation8], 0
          %s1402 = sshll.u32 [#allocation12], 4
          %s1403 = int_to_ptr.vmem [resolvable:$true] %s1402
          %s1404 = sshll.u32 %s9, 4
          %s1405 = int_to_ptr.hbm [resolvable:$true] %s1404
          %1410 = dma.vmem_to_hbm [thread:$0]  %s1403, 256, %s1405, [#allocation8], 128, 128, 8
        $region76: #{tpu_custom_call.1} parent=51 // pred_fallthru
          _
        // Predicated region
        $region77: #{tpu_custom_call.1} parent=51 // pred_check
          %p1411 = pneg %p239
        $region78: #{tpu_custom_call.1} parent=51 // pred_check_branch
          %1413 = sbr.rel (%p1411) target = $region80
        $region79: #{tpu_custom_call.1} parent=51 // pred_region
          %1415 = dma.done [#allocation8], 256
        $region80: #{tpu_custom_call.1} parent=51 // pred_fallthru
          _
      $region52: #{tpu_custom_call.1} parent=5 // pred_fallthru
        _
      %p1416 = scmp.le.s32.totalorder 2, %s28
      // Predicated region
      $region81: #{tpu_custom_call.1} parent=5 // pred_check
        %p1417 = pneg %p1416
      $region82: #{tpu_custom_call.1} parent=5 // pred_check_branch
        %1419 = sbr.rel (%p1417) target = $region84
      $region83: #{tpu_custom_call.1} parent=5 // pred_region
        %s1420 = ssub.s32 %s28, 2
      $region84: #{tpu_custom_call.1} parent=5 // pred_fallthru
        _
    $region6: #{tpu_custom_call.1} parent=1 // loop_footer
      %s32 = sadd.s32 1, %s28
    $region7: #{tpu_custom_call.1} parent=1 // loop_footer_branch
      %27 = sbr.rel target = $region3
    $region8: #{tpu_custom_call.1} parent=1 // loop_exit
      _
    %1421 = vsyncpa [#allocation7], 1
    %s1422 = scalar_lea.sflag [#allocation7], 1
    %1423 = vsyncpa %s1422, 1
    %1424 = vsyncpa [#allocation10], 1
    %s1425 = scalar_lea.sflag [#allocation10], 1
    %1426 = vsyncpa %s1425, 1
    %1427 = vsyncpa [#allocation8], 1
    %s1428 = scalar_lea.sflag [#allocation8], 1
    %1429 = vsyncpa %s1428, 1

</llo_original>
